<compile_context>
chip_gen: v7x
topology: tpu7x:2x2x1
jax: 0.10.0
libtpu: 0.0.40
codegen_flags: <defaults>
</compile_context>

<pallas_src>
import jax
import jax.numpy as jnp
from jax.experimental import pallas as pl
from jax.experimental.pallas import tpu as pltpu


def _round_up(n, m):
    return ((n + m - 1) // m) * m


def _cdiv(a, b):
    return (a + b - 1) // b


def _tpu_generation():
    try:
        kind = jax.devices()[0].device_kind.lower().replace(" ", "")
    except Exception:
        return "unknown"
    if "v7" in kind or "tpu7" in kind:
        return "v7x"
    if "v6" in kind:
        return "v6e"
    if "v5" in kind:
        return "v5e"
    return "unknown"


def _pick_tb(B, batch_tile, num_cores):
    """Batch tile: multiple of 16 (bf16 sublane packing), <= batch_tile-ish,
    and on multi-core parts enough tiles that no core idles."""
    B16 = _round_up(max(B, 1), 16)
    batch_tile = max(16, _round_up(batch_tile, 16))
    groups = _cdiv(B16, batch_tile)
    if num_cores > 1:
        groups = _round_up(groups, num_cores)
    tb = _round_up(_cdiv(B16, groups), 16)
    return min(tb, B16)


def make_cvae_kernel(latent, bf16_sigmoid):
    def cvae_kernel(
        x_ref, c_ref, eps_ref,                       # streamed per batch tile
        w1x_ref, w1c_ref, b1_ref,                    # resident weights / biases
        wmulv_ref, bmulv_ref,
        w3z_ref, w3c_ref, b3_ref,
        w4_ref, b4_ref,
        recon_ref, packed_ref,                       # outputs (bf16)
    ):
        f32 = jnp.float32
        bf16 = jnp.bfloat16
        c = c_ref[...]                               # bf16 [TB, num_classes]

        # ---- encode: h1 = relu(x @ W1x + c @ W1c + b1) ----------------------
        h1 = (jnp.dot(x_ref[...], w1x_ref[...], preferred_element_type=f32)
              + jnp.dot(c, w1c_ref[...], preferred_element_type=f32)
              + b1_ref[...])
        h1 = jnp.maximum(h1, 0.0)

        # fused mu/logvar matmul: [TB, hidden] @ [hidden, 2*latent]
        mulv = (jnp.dot(h1.astype(bf16), wmulv_ref[...], preferred_element_type=f32)
                + bmulv_ref[...])
        mu = mulv[:, :latent]
        logvar = mulv[:, latent:]

        # ---- reparameterize (f32 elementwise; EUP exp) -----------------------
        std = jnp.exp(0.5 * logvar)
        z = mu + eps_ref[...] * std

        # ---- decode: sigmoid(relu(z @ W3z + c @ W3c + b3) @ W4 + b4) ---------
        h3 = (jnp.dot(z.astype(bf16), w3z_ref[...], preferred_element_type=f32)
              + jnp.dot(c, w3c_ref[...], preferred_element_type=f32)
              + b3_ref[...])
        h3 = jnp.maximum(h3, 0.0)
        logits = (jnp.dot(h3.astype(bf16), w4_ref[...], preferred_element_type=f32)
                  + b4_ref[...])
        if bf16_sigmoid:                              # v6e/v7x: bf16 EUP
            recon_ref[...] = jax.nn.sigmoid(logits.astype(bf16))
        else:                                         # v5e: no bf16 EUP
            recon_ref[...] = jax.nn.sigmoid(logits).astype(bf16)

        # ---- lane-dense packed small outputs: [mu | logvar | z | zero pad] ---
        packed = jnp.concatenate([mu, logvar, z], axis=1)
        pad = packed_ref.shape[1] - packed.shape[1]
        if pad > 0:
            packed = jnp.concatenate(
                [packed, jnp.zeros((packed.shape[0], pad), f32)], axis=1)
        packed_ref[...] = packed.astype(bf16)

    return cvae_kernel


def cvae_forward(x, c, eps, params, *, batch_tile=None):
    """x: [B, input_dim] f32, c: [B, num_classes] f32 (one-hot ok), eps: [B, latent] f32."""
    B, input_dim = x.shape
    num_classes = c.shape[1]
    hidden = params["w1x"].shape[1]
    latent = params["w3z"].shape[0]

    # ---- per-generation tuning ---------------------------------------------
    gen = _tpu_generation()
    num_cores = 2 if gen == "v7x" else 1
    if batch_tile is None:
        batch_tile = 2048 if gen in ("v5e", "v6e") else 512
    vmem_limit = 96 * 1024 * 1024 if gen in ("v5e", "v6e") else 48 * 1024 * 1024
    bf16_sigmoid = gen in ("v6e", "v7x")

    tb = _pick_tb(B, batch_tile, num_cores)
    B_pad = _round_up(B, tb)
    nt = B_pad // tb

    def pad_b(a):
        return jnp.pad(a, ((0, B_pad - B), (0, 0))) if B_pad != B else a

    x_bf = pad_b(x.astype(jnp.bfloat16))
    c_bf = pad_b(c.astype(jnp.bfloat16))
    eps_p = pad_b(eps)

    pack_w = _round_up(3 * latent, 128)

    def act_spec(width):
        return pl.BlockSpec((tb, width), lambda i: (i, 0))

    def build(single_buffer_weights):
        def res_spec(shape):
            if single_buffer_weights:
                return pl.BlockSpec(shape, lambda i: (0, 0),
                                    pipeline_mode=pl.Buffered(1))
            return pl.BlockSpec(shape, lambda i: (0, 0))

        grid_spec = pltpu.PrefetchScalarGridSpec(
            num_scalar_prefetch=0,
            grid=(nt,),
            in_specs=[
                act_spec(input_dim),                 # x      (bf16, streamed)
                act_spec(num_classes),               # c      (bf16, streamed)
                act_spec(latent),                    # eps    (f32, streamed)
                res_spec(params["w1x"].shape),       # w1x    (bf16, resident)
                res_spec(params["w1c"].shape),       # w1c    (bf16, resident)
                res_spec(params["b1"].shape),        # b1     (f32)
                res_spec(params["wmulv"].shape),     # wmulv  (bf16)
                res_spec(params["bmulv"].shape),     # bmulv  (f32)
                res_spec(params["w3z"].shape),       # w3z    (bf16)
                res_spec(params["w3c"].shape),       # w3c    (bf16)
                res_spec(params["b3"].shape),        # b3     (f32)
                res_spec(params["w4"].shape),        # w4     (bf16)
                res_spec(params["b4"].shape),        # b4     (f32)
            ],
            out_specs=(
                pl.BlockSpec((tb, input_dim), lambda i: (i, 0)),   # recon (bf16)
                pl.BlockSpec((tb, pack_w), lambda i: (i, 0)),      # packed (bf16)
            ),
        )
        return pl.pallas_call(
            make_cvae_kernel(latent, bf16_sigmoid),
            grid_spec=grid_spec,
            out_shape=(
                jax.ShapeDtypeStruct((B_pad, input_dim), jnp.bfloat16),
                jax.ShapeDtypeStruct((B_pad, pack_w), jnp.bfloat16),
            ),
            compiler_params=pltpu.CompilerParams(
                dimension_semantics=("parallel",),   # batch tiles across TCs
                vmem_limit_bytes=vmem_limit,
            ),
        )

    args = (
        x_bf, c_bf, eps_p,
        params["w1x"], params["w1c"], params["b1"],
        params["wmulv"], params["bmulv"],
        params["w3z"], params["w3c"], params["b3"],
        params["w4"], params["b4"],
    )
    try:
        recon, packed = build(True)(*args)
    except Exception:
        # pipeline_mode=pl.Buffered(1) unsupported on this jax: use default
        # double-buffered resident specs (identical semantics).
        recon, packed = build(False)(*args)

    recon = recon[:B].astype(jnp.float32)
    packed = packed[:B].astype(jnp.float32)
    mu = packed[:, 0:latent]
    logvar = packed[:, latent:2 * latent]
    z = packed[:, 2 * latent:3 * latent]
    return recon, mu, logvar, z


def init_params(key, input_dim, hidden_dim, latent_dim, num_classes):
    """nn.Linear-style U(-1/sqrt(fan_in), 1/sqrt(fan_in)) init. Weights stored
    [in, out]; matmul weights in bf16 (f32 accumulation), biases in f32."""
    def linear(k, fan_in, fan_out):
        kw, kb = jax.random.split(k)
        bound = 1.0 / jnp.sqrt(fan_in)
        w = jax.random.uniform(kw, (fan_in, fan_out), jnp.float32, -bound, bound)
        b = jax.random.uniform(kb, (1, fan_out), jnp.float32, -bound, bound)
        return w, b

    k1, k2, k3, k4, k5 = jax.random.split(key, 5)
    w1, b1 = linear(k1, input_dim + num_classes, hidden_dim)     # fc1
    wmu, bmu = linear(k2, hidden_dim, latent_dim)                # fc_mu
    wlv, blv = linear(k3, hidden_dim, latent_dim)                # fc_logvar
    w3, b3 = linear(k4, latent_dim + num_classes, hidden_dim)    # fc3
    w4, b4 = linear(k5, hidden_dim, input_dim)                   # fc4

    bf16 = jnp.bfloat16
    return {
        # fc1 split: x-part and c-part are both in-kernel bf16 matmuls now.
        "w1x": w1[:input_dim].astype(bf16),
        "w1c": w1[input_dim:].astype(bf16),
        "b1": b1,
        # fused mu/logvar projection
        "wmulv": jnp.concatenate([wmu, wlv], axis=1).astype(bf16),
        "bmulv": jnp.concatenate([bmu, blv], axis=1),
        # fc3 split: z-part and c-part in-kernel.
        "w3z": w3[:latent_dim].astype(bf16),
        "w3c": w3[latent_dim:].astype(bf16),
        "b3": b3,
        "w4": w4.astype(bf16),
        "b4": b4,
    }


if __name__ == "__main__":
    # Small, TPU-friendly shapes consistent with the module's forward.
    B, INPUT_DIM, HIDDEN_DIM, LATENT_DIM, NUM_CLASSES = 32, 256, 128, 16, 10

    key = jax.random.PRNGKey(0)
    kp, kx, kc, ke = jax.random.split(key, 4)

    params = init_params(kp, INPUT_DIM, HIDDEN_DIM, LATENT_DIM, NUM_CLASSES)

    x = jax.random.uniform(kx, (B, INPUT_DIM), jnp.float32)          # "pixels" in [0,1)
    labels = jax.random.randint(kc, (B,), 0, NUM_CLASSES)
    c = jax.nn.one_hot(labels, NUM_CLASSES, dtype=jnp.float32)       # class condition
    # TODO(synk): torch.randn_like(std) is RNG inside forward(); here the
    # reparameterization noise is passed explicitly as an input.
    eps = jax.random.normal(ke, (B, LATENT_DIM), jnp.float32)

    # batch_tile=16 -> 2 grid steps, exercises the pipelined batch grid.
    recon_x, mu, logvar, z = cvae_forward(x, c, eps, params, batch_tile=16)
    jax.block_until_ready((recon_x, mu, logvar, z))

    # ---- plain-JAX reference with the same bf16 operand rounding ------------
    f32 = jnp.float32
    bf16 = jnp.bfloat16
    w1x = params["w1x"].astype(f32)
    w1c = params["w1c"].astype(f32)
    wmulv = params["wmulv"].astype(f32)
    w3z = params["w3z"].astype(f32)
    w3c = params["w3c"].astype(f32)
    w4 = params["w4"].astype(f32)

    xb = x.astype(bf16).astype(f32)
    cb = c.astype(bf16).astype(f32)
    h1 = jnp.maximum(xb @ w1x + cb @ w1c + params["b1"], 0.0)
    mulv = h1.astype(bf16).astype(f32) @ wmulv + params["bmulv"]
    mu_r, lv_r = mulv[:, :LATENT_DIM], mulv[:, LATENT_DIM:]
    z_r = mu_r + eps * jnp.exp(0.5 * lv_r)
    h3 = jnp.maximum(z_r.astype(bf16).astype(f32) @ w3z + cb @ w3c + params["b3"], 0.0)
    rx_r = jax.nn.sigmoid(h3.astype(bf16).astype(f32) @ w4 + params["b4"])

    # bf16 output stores + bf16-operand matmuls -> ~1e-2 scale tolerance.
    assert jnp.allclose(mu, mu_r, atol=3e-2), "mu mismatch"
    assert jnp.allclose(logvar, lv_r, atol=3e-2), "logvar mismatch"
    assert jnp.allclose(z, z_r, atol=3e-2), "z mismatch"
    assert jnp.allclose(recon_x, rx_r, atol=3e-2), "recon mismatch"

    print("KERNEL_OK")
</pallas_src>

<mosaic_0001>
module attributes {stable_mosaic.version = 11 : i64} {
  func.func @cvae_kernel(%arg0: i32, %arg1: memref<16x256xbf16, #tpu.memory_space<vmem>>, %arg2: memref<16x10xbf16, #tpu.memory_space<vmem>>, %arg3: memref<16x16xf32, #tpu.memory_space<vmem>>, %arg4: memref<256x128xbf16, #tpu.memory_space<vmem>>, %arg5: memref<10x128xbf16, #tpu.memory_space<vmem>>, %arg6: memref<1x128xf32, #tpu.memory_space<vmem>>, %arg7: memref<128x32xbf16, #tpu.memory_space<vmem>>, %arg8: memref<1x32xf32, #tpu.memory_space<vmem>>, %arg9: memref<16x128xbf16, #tpu.memory_space<vmem>>, %arg10: memref<10x128xbf16, #tpu.memory_space<vmem>>, %arg11: memref<1x128xf32, #tpu.memory_space<vmem>>, %arg12: memref<128x256xbf16, #tpu.memory_space<vmem>>, %arg13: memref<1x256xf32, #tpu.memory_space<vmem>>, %arg14: memref<16x256xbf16, #tpu.memory_space<vmem>>, %arg15: memref<16x128xbf16, #tpu.memory_space<vmem>>) attributes {dimension_semantics = [#tpu.dimension_semantics<parallel>], iteration_bounds = array<i64: 2>, scalar_prefetch = 0 : i64, scratch_operands = 0 : i64, tpu.core_type = #tpu.core_type<tc>, window_params = [{transform_indices = @transform_0, window_bounds = array<i64: 16, 256>}, {transform_indices = @transform_1, window_bounds = array<i64: 16, 10>}, {transform_indices = @transform_2, window_bounds = array<i64: 16, 16>}, {pipeline_mode = #tpu.pipeline_mode<synchronous>, transform_indices = @transform_3, window_bounds = array<i64: 256, 128>}, {pipeline_mode = #tpu.pipeline_mode<synchronous>, transform_indices = @transform_4, window_bounds = array<i64: 10, 128>}, {pipeline_mode = #tpu.pipeline_mode<synchronous>, transform_indices = @transform_5, window_bounds = array<i64: 1, 128>}, {pipeline_mode = #tpu.pipeline_mode<synchronous>, transform_indices = @transform_6, window_bounds = array<i64: 128, 32>}, {pipeline_mode = #tpu.pipeline_mode<synchronous>, transform_indices = @transform_7, window_bounds = array<i64: 1, 32>}, {pipeline_mode = #tpu.pipeline_mode<synchronous>, transform_indices = @transform_8, window_bounds = array<i64: 16, 128>}, {pipeline_mode = #tpu.pipeline_mode<synchronous>, transform_indices = @transform_9, window_bounds = array<i64: 10, 128>}, {pipeline_mode = #tpu.pipeline_mode<synchronous>, transform_indices = @transform_10, window_bounds = array<i64: 1, 128>}, {pipeline_mode = #tpu.pipeline_mode<synchronous>, transform_indices = @transform_11, window_bounds = array<i64: 128, 256>}, {pipeline_mode = #tpu.pipeline_mode<synchronous>, transform_indices = @transform_12, window_bounds = array<i64: 1, 256>}, {transform_indices = @transform_13, window_bounds = array<i64: 16, 256>}, {transform_indices = @transform_14, window_bounds = array<i64: 16, 128>}]} {
    %c0 = arith.constant 0 : index
    %c0_0 = arith.constant 0 : index
    %0 = vector.load %arg2[%c0, %c0_0] : memref<16x10xbf16, #tpu.memory_space<vmem>>, vector<16x10xbf16>
    %c0_1 = arith.constant 0 : index
    %c0_2 = arith.constant 0 : index
    %1 = vector.load %arg1[%c0_1, %c0_2] : memref<16x256xbf16, #tpu.memory_space<vmem>>, vector<16x256xbf16>
    %c0_3 = arith.constant 0 : index
    %c0_4 = arith.constant 0 : index
    %2 = vector.load %arg4[%c0_3, %c0_4] : memref<256x128xbf16, #tpu.memory_space<vmem>>, vector<256x128xbf16>
    %cst = arith.constant dense<0.000000e+00> : vector<16x128xf32>
    %3 = tpu.matmul %1, %2, %cst {dimension_numbers = #tpu.dot_dimension_numbers<[1], [0], [0], [1], [0, 0, 1, 1], [], []>} : vector<16x256xbf16>, vector<256x128xbf16>, vector<16x128xf32> -> vector<16x128xf32>
    %c0_5 = arith.constant 0 : index
    %c0_6 = arith.constant 0 : index
    %4 = vector.load %arg5[%c0_5, %c0_6] : memref<10x128xbf16, #tpu.memory_space<vmem>>, vector<10x128xbf16>
    %cst_7 = arith.constant dense<0.000000e+00> : vector<16x128xf32>
    %5 = tpu.matmul %0, %4, %cst_7 {dimension_numbers = #tpu.dot_dimension_numbers<[1], [0], [0], [1], [0, 0, 1, 1], [], []>} : vector<16x10xbf16>, vector<10x128xbf16>, vector<16x128xf32> -> vector<16x128xf32>
    %6 = arith.addf %3, %5 : vector<16x128xf32>
    %c0_8 = arith.constant 0 : index
    %c0_9 = arith.constant 0 : index
    %7 = vector.load %arg6[%c0_8, %c0_9] : memref<1x128xf32, #tpu.memory_space<vmem>>, vector<1x128xf32>
    %8 = vector.broadcast %7 : vector<1x128xf32> to vector<16x128xf32>
    %9 = arith.addf %6, %8 : vector<16x128xf32>
    %cst_10 = arith.constant 0.000000e+00 : f32
    %10 = vector.broadcast %cst_10 : f32 to vector<16x128xf32>
    %11 = arith.maximumf %9, %10 : vector<16x128xf32>
    %12 = arith.truncf %11 : vector<16x128xf32> to vector<16x128xbf16>
    %c0_11 = arith.constant 0 : index
    %c0_12 = arith.constant 0 : index
    %13 = vector.load %arg7[%c0_11, %c0_12] : memref<128x32xbf16, #tpu.memory_space<vmem>>, vector<128x32xbf16>
    %cst_13 = arith.constant dense<0.000000e+00> : vector<16x32xf32>
    %14 = tpu.matmul %12, %13, %cst_13 {dimension_numbers = #tpu.dot_dimension_numbers<[1], [0], [0], [1], [0, 0, 1, 1], [], []>} : vector<16x128xbf16>, vector<128x32xbf16>, vector<16x32xf32> -> vector<16x32xf32>
    %c0_14 = arith.constant 0 : index
    %c0_15 = arith.constant 0 : index
    %15 = vector.load %arg8[%c0_14, %c0_15] : memref<1x32xf32, #tpu.memory_space<vmem>>, vector<1x32xf32>
    %16 = vector.broadcast %15 : vector<1x32xf32> to vector<16x32xf32>
    %17 = arith.addf %14, %16 : vector<16x32xf32>
    %18 = vector.extract_strided_slice %17 {offsets = [0, 0], sizes = [16, 16], strides = [1, 1]} : vector<16x32xf32> to vector<16x16xf32>
    %19 = vector.extract_strided_slice %17 {offsets = [0, 16], sizes = [16, 16], strides = [1, 1]} : vector<16x32xf32> to vector<16x16xf32>
    %cst_16 = arith.constant 5.000000e-01 : f32
    %20 = vector.broadcast %cst_16 : f32 to vector<16x16xf32>
    %21 = arith.mulf %20, %19 : vector<16x16xf32>
    %22 = math.exp %21 : vector<16x16xf32>
    %c0_17 = arith.constant 0 : index
    %c0_18 = arith.constant 0 : index
    %23 = vector.load %arg3[%c0_17, %c0_18] : memref<16x16xf32, #tpu.memory_space<vmem>>, vector<16x16xf32>
    %24 = arith.mulf %23, %22 : vector<16x16xf32>
    %25 = arith.addf %18, %24 : vector<16x16xf32>
    %26 = arith.truncf %25 : vector<16x16xf32> to vector<16x16xbf16>
    %c0_19 = arith.constant 0 : index
    %c0_20 = arith.constant 0 : index
    %27 = vector.load %arg9[%c0_19, %c0_20] : memref<16x128xbf16, #tpu.memory_space<vmem>>, vector<16x128xbf16>
    %cst_21 = arith.constant dense<0.000000e+00> : vector<16x128xf32>
    %28 = tpu.matmul %26, %27, %cst_21 {dimension_numbers = #tpu.dot_dimension_numbers<[1], [0], [0], [1], [0, 0, 1, 1], [], []>} : vector<16x16xbf16>, vector<16x128xbf16>, vector<16x128xf32> -> vector<16x128xf32>
    %c0_22 = arith.constant 0 : index
    %c0_23 = arith.constant 0 : index
    %29 = vector.load %arg10[%c0_22, %c0_23] : memref<10x128xbf16, #tpu.memory_space<vmem>>, vector<10x128xbf16>
    %cst_24 = arith.constant dense<0.000000e+00> : vector<16x128xf32>
    %30 = tpu.matmul %0, %29, %cst_24 {dimension_numbers = #tpu.dot_dimension_numbers<[1], [0], [0], [1], [0, 0, 1, 1], [], []>} : vector<16x10xbf16>, vector<10x128xbf16>, vector<16x128xf32> -> vector<16x128xf32>
    %31 = arith.addf %28, %30 : vector<16x128xf32>
    %c0_25 = arith.constant 0 : index
    %c0_26 = arith.constant 0 : index
    %32 = vector.load %arg11[%c0_25, %c0_26] : memref<1x128xf32, #tpu.memory_space<vmem>>, vector<1x128xf32>
    %33 = vector.broadcast %32 : vector<1x128xf32> to vector<16x128xf32>
    %34 = arith.addf %31, %33 : vector<16x128xf32>
    %cst_27 = arith.constant 0.000000e+00 : f32
    %35 = vector.broadcast %cst_27 : f32 to vector<16x128xf32>
    %36 = arith.maximumf %34, %35 : vector<16x128xf32>
    %37 = arith.truncf %36 : vector<16x128xf32> to vector<16x128xbf16>
    %c0_28 = arith.constant 0 : index
    %c0_29 = arith.constant 0 : index
    %38 = vector.load %arg12[%c0_28, %c0_29] : memref<128x256xbf16, #tpu.memory_space<vmem>>, vector<128x256xbf16>
    %cst_30 = arith.constant dense<0.000000e+00> : vector<16x256xf32>
    %39 = tpu.matmul %37, %38, %cst_30 {dimension_numbers = #tpu.dot_dimension_numbers<[1], [0], [0], [1], [0, 0, 1, 1], [], []>} : vector<16x128xbf16>, vector<128x256xbf16>, vector<16x256xf32> -> vector<16x256xf32>
    %c0_31 = arith.constant 0 : index
    %c0_32 = arith.constant 0 : index
    %40 = vector.load %arg13[%c0_31, %c0_32] : memref<1x256xf32, #tpu.memory_space<vmem>>, vector<1x256xf32>
    %41 = vector.broadcast %40 : vector<1x256xf32> to vector<16x256xf32>
    %42 = arith.addf %39, %41 : vector<16x256xf32>
    %43 = arith.negf %42 : vector<16x256xf32>
    %44 = math.exp %43 : vector<16x256xf32>
    %cst_33 = arith.constant 1.000000e+00 : f32
    %45 = vector.broadcast %cst_33 : f32 to vector<16x256xf32>
    %46 = arith.addf %45, %44 : vector<16x256xf32>
    %47 = arith.divf %45, %46 : vector<16x256xf32>
    %48 = arith.truncf %47 : vector<16x256xf32> to vector<16x256xbf16>
    %c0_34 = arith.constant 0 : index
    %c0_35 = arith.constant 0 : index
    %49 = vector.load %arg14[%c0_34, %c0_35] : memref<16x256xbf16, #tpu.memory_space<vmem>>, vector<16x256xbf16>
    tpu.vector_store %arg14[%c0_34, %c0_35], %48 {strides = array<i32>} : memref<16x256xbf16, #tpu.memory_space<vmem>>, vector<16x256xbf16>,
    %50 = tpu.concatenate %18, %19, %25 in 1 : vector<16x16xf32>, vector<16x16xf32>, vector<16x16xf32> -> vector<16x48xf32>
    %cst_36 = arith.constant 0.000000e+00 : f32
    %51 = vector.broadcast %cst_36 : f32 to vector<16x80xf32>
    %52 = tpu.concatenate %50, %51 in 1 : vector<16x48xf32>, vector<16x80xf32> -> vector<16x128xf32>
    %53 = arith.truncf %52 : vector<16x128xf32> to vector<16x128xbf16>
    %c0_37 = arith.constant 0 : index
    %c0_38 = arith.constant 0 : index
    %54 = vector.load %arg15[%c0_37, %c0_38] : memref<16x128xbf16, #tpu.memory_space<vmem>>, vector<16x128xbf16>
    tpu.vector_store %arg15[%c0_37, %c0_38], %53 {strides = array<i32>} : memref<16x128xbf16, #tpu.memory_space<vmem>>, vector<16x128xbf16>,
    return
  }
  func.func @transform_0(%arg0: i32) -> (i32, i32) {
    %c0_i32 = arith.constant 0 : i32
    %c0_i32_0 = arith.constant 0 : i32
    return %arg0, %c0_i32 : i32, i32
  }
  func.func @transform_1(%arg0: i32) -> (i32, i32) {
    %c0_i32 = arith.constant 0 : i32
    %c0_i32_0 = arith.constant 0 : i32
    return %arg0, %c0_i32 : i32, i32
  }
  func.func @transform_2(%arg0: i32) -> (i32, i32) {
    %c0_i32 = arith.constant 0 : i32
    %c0_i32_0 = arith.constant 0 : i32
    return %arg0, %c0_i32 : i32, i32
  }
  func.func @transform_3(%arg0: i32) -> (i32, i32) {
    %c0_i32 = arith.constant 0 : i32
    %c0_i32_0 = arith.constant 0 : i32
    %c0_i32_1 = arith.constant 0 : i32
    return %c0_i32, %c0_i32_0 : i32, i32
  }
  func.func @transform_4(%arg0: i32) -> (i32, i32) {
    %c0_i32 = arith.constant 0 : i32
    %c0_i32_0 = arith.constant 0 : i32
    %c0_i32_1 = arith.constant 0 : i32
    return %c0_i32, %c0_i32_0 : i32, i32
  }
  func.func @transform_5(%arg0: i32) -> (i32, i32) {
    %c0_i32 = arith.constant 0 : i32
    %c0_i32_0 = arith.constant 0 : i32
    %c0_i32_1 = arith.constant 0 : i32
    return %c0_i32, %c0_i32_0 : i32, i32
  }
  func.func @transform_6(%arg0: i32) -> (i32, i32) {
    %c0_i32 = arith.constant 0 : i32
    %c0_i32_0 = arith.constant 0 : i32
    %c0_i32_1 = arith.constant 0 : i32
    return %c0_i32, %c0_i32_0 : i32, i32
  }
  func.func @transform_7(%arg0: i32) -> (i32, i32) {
    %c0_i32 = arith.constant 0 : i32
    %c0_i32_0 = arith.constant 0 : i32
    %c0_i32_1 = arith.constant 0 : i32
    return %c0_i32, %c0_i32_0 : i32, i32
  }
  func.func @transform_8(%arg0: i32) -> (i32, i32) {
    %c0_i32 = arith.constant 0 : i32
    %c0_i32_0 = arith.constant 0 : i32
    %c0_i32_1 = arith.constant 0 : i32
    return %c0_i32, %c0_i32_0 : i32, i32
  }
  func.func @transform_9(%arg0: i32) -> (i32, i32) {
    %c0_i32 = arith.constant 0 : i32
    %c0_i32_0 = arith.constant 0 : i32
    %c0_i32_1 = arith.constant 0 : i32
    return %c0_i32, %c0_i32_0 : i32, i32
  }
  func.func @transform_10(%arg0: i32) -> (i32, i32) {
    %c0_i32 = arith.constant 0 : i32
    %c0_i32_0 = arith.constant 0 : i32
    %c0_i32_1 = arith.constant 0 : i32
    return %c0_i32, %c0_i32_0 : i32, i32
  }
  func.func @transform_11(%arg0: i32) -> (i32, i32) {
    %c0_i32 = arith.constant 0 : i32
    %c0_i32_0 = arith.constant 0 : i32
    %c0_i32_1 = arith.constant 0 : i32
    return %c0_i32, %c0_i32_0 : i32, i32
  }
  func.func @transform_12(%arg0: i32) -> (i32, i32) {
    %c0_i32 = arith.constant 0 : i32
    %c0_i32_0 = arith.constant 0 : i32
    %c0_i32_1 = arith.constant 0 : i32
    return %c0_i32, %c0_i32_0 : i32, i32
  }
  func.func @transform_13(%arg0: i32) -> (i32, i32) {
    %c0_i32 = arith.constant 0 : i32
    %c0_i32_0 = arith.constant 0 : i32
    return %arg0, %c0_i32 : i32, i32
  }
  func.func @transform_14(%arg0: i32) -> (i32, i32) {
    %c0_i32 = arith.constant 0 : i32
    %c0_i32_0 = arith.constant 0 : i32
    return %arg0, %c0_i32 : i32, i32
  }
}

module attributes {stable_mosaic.version = 11 : i64} {
  func.func @cvae_kernel(%arg0: i32, %arg1: memref<16x256xbf16, #tpu.memory_space<vmem>>, %arg2: memref<16x10xbf16, #tpu.memory_space<vmem>>, %arg3: memref<16x16xf32, #tpu.memory_space<vmem>>, %arg4: memref<256x128xbf16, #tpu.memory_space<vmem>>, %arg5: memref<10x128xbf16, #tpu.memory_space<vmem>>, %arg6: memref<1x128xf32, #tpu.memory_space<vmem>>, %arg7: memref<128x32xbf16, #tpu.memory_space<vmem>>, %arg8: memref<1x32xf32, #tpu.memory_space<vmem>>, %arg9: memref<16x128xbf16, #tpu.memory_space<vmem>>, %arg10: memref<10x128xbf16, #tpu.memory_space<vmem>>, %arg11: memref<1x128xf32, #tpu.memory_space<vmem>>, %arg12: memref<128x256xbf16, #tpu.memory_space<vmem>>, %arg13: memref<1x256xf32, #tpu.memory_space<vmem>>, %arg14: memref<16x256xbf16, #tpu.memory_space<vmem>>, %arg15: memref<16x128xbf16, #tpu.memory_space<vmem>>) attributes {dimension_semantics = [#tpu.dimension_semantics<parallel>], iteration_bounds = array<i64: 2>, scalar_prefetch = 0 : i64, scratch_operands = 0 : i64, tpu.core_type = #tpu.core_type<tc>, window_params = [{transform_indices = @transform_0, window_bounds = array<i64: 16, 256>}, {transform_indices = @transform_1, window_bounds = array<i64: 16, 10>}, {transform_indices = @transform_2, window_bounds = array<i64: 16, 16>}, {pipeline_mode = #tpu.pipeline_mode<synchronous>, transform_indices = @transform_3, window_bounds = array<i64: 256, 128>}, {pipeline_mode = #tpu.pipeline_mode<synchronous>, transform_indices = @transform_4, window_bounds = array<i64: 10, 128>}, {pipeline_mode = #tpu.pipeline_mode<synchronous>, transform_indices = @transform_5, window_bounds = array<i64: 1, 128>}, {pipeline_mode = #tpu.pipeline_mode<synchronous>, transform_indices = @transform_6, window_bounds = array<i64: 128, 32>}, {pipeline_mode = #tpu.pipeline_mode<synchronous>, transform_indices = @transform_7, window_bounds = array<i64: 1, 32>}, {pipeline_mode = #tpu.pipeline_mode<synchronous>, transform_indices = @transform_8, window_bounds = array<i64: 16, 128>}, {pipeline_mode = #tpu.pipeline_mode<synchronous>, transform_indices = @transform_9, window_bounds = array<i64: 10, 128>}, {pipeline_mode = #tpu.pipeline_mode<synchronous>, transform_indices = @transform_10, window_bounds = array<i64: 1, 128>}, {pipeline_mode = #tpu.pipeline_mode<synchronous>, transform_indices = @transform_11, window_bounds = array<i64: 128, 256>}, {pipeline_mode = #tpu.pipeline_mode<synchronous>, transform_indices = @transform_12, window_bounds = array<i64: 1, 256>}, {transform_indices = @transform_13, window_bounds = array<i64: 16, 256>}, {transform_indices = @transform_14, window_bounds = array<i64: 16, 128>}]} {
    %c0 = arith.constant 0 : index
    %c0_0 = arith.constant 0 : index
    %0 = vector.load %arg2[%c0, %c0_0] : memref<16x10xbf16, #tpu.memory_space<vmem>>, vector<16x10xbf16>
    %c0_1 = arith.constant 0 : index
    %c0_2 = arith.constant 0 : index
    %1 = vector.load %arg1[%c0_1, %c0_2] : memref<16x256xbf16, #tpu.memory_space<vmem>>, vector<16x256xbf16>
    %c0_3 = arith.constant 0 : index
    %c0_4 = arith.constant 0 : index
    %2 = vector.load %arg4[%c0_3, %c0_4] : memref<256x128xbf16, #tpu.memory_space<vmem>>, vector<256x128xbf16>
    %cst = arith.constant dense<0.000000e+00> : vector<16x128xf32>
    %3 = tpu.matmul %1, %2, %cst {dimension_numbers = #tpu.dot_dimension_numbers<[1], [0], [0], [1], [0, 0, 1, 1], [], []>} : vector<16x256xbf16>, vector<256x128xbf16>, vector<16x128xf32> -> vector<16x128xf32>
    %c0_5 = arith.constant 0 : index
    %c0_6 = arith.constant 0 : index
    %4 = vector.load %arg5[%c0_5, %c0_6] : memref<10x128xbf16, #tpu.memory_space<vmem>>, vector<10x128xbf16>
    %cst_7 = arith.constant dense<0.000000e+00> : vector<16x128xf32>
    %5 = tpu.matmul %0, %4, %cst_7 {dimension_numbers = #tpu.dot_dimension_numbers<[1], [0], [0], [1], [0, 0, 1, 1], [], []>} : vector<16x10xbf16>, vector<10x128xbf16>, vector<16x128xf32> -> vector<16x128xf32>
    %6 = arith.addf %3, %5 : vector<16x128xf32>
    %c0_8 = arith.constant 0 : index
    %c0_9 = arith.constant 0 : index
    %7 = vector.load %arg6[%c0_8, %c0_9] : memref<1x128xf32, #tpu.memory_space<vmem>>, vector<1x128xf32>
    %8 = vector.broadcast %7 : vector<1x128xf32> to vector<16x128xf32>
    %9 = arith.addf %6, %8 : vector<16x128xf32>
    %cst_10 = arith.constant 0.000000e+00 : f32
    %10 = vector.broadcast %cst_10 : f32 to vector<16x128xf32>
    %11 = arith.maximumf %9, %10 : vector<16x128xf32>
    %12 = arith.truncf %11 : vector<16x128xf32> to vector<16x128xbf16>
    %c0_11 = arith.constant 0 : index
    %c0_12 = arith.constant 0 : index
    %13 = vector.load %arg7[%c0_11, %c0_12] : memref<128x32xbf16, #tpu.memory_space<vmem>>, vector<128x32xbf16>
    %cst_13 = arith.constant dense<0.000000e+00> : vector<16x32xf32>
    %14 = tpu.matmul %12, %13, %cst_13 {dimension_numbers = #tpu.dot_dimension_numbers<[1], [0], [0], [1], [0, 0, 1, 1], [], []>} : vector<16x128xbf16>, vector<128x32xbf16>, vector<16x32xf32> -> vector<16x32xf32>
    %c0_14 = arith.constant 0 : index
    %c0_15 = arith.constant 0 : index
    %15 = vector.load %arg8[%c0_14, %c0_15] : memref<1x32xf32, #tpu.memory_space<vmem>>, vector<1x32xf32>
    %16 = vector.broadcast %15 : vector<1x32xf32> to vector<16x32xf32>
    %17 = arith.addf %14, %16 : vector<16x32xf32>
    %18 = vector.extract_strided_slice %17 {offsets = [0, 0], sizes = [16, 16], strides = [1, 1]} : vector<16x32xf32> to vector<16x16xf32>
    %19 = vector.extract_strided_slice %17 {offsets = [0, 16], sizes = [16, 16], strides = [1, 1]} : vector<16x32xf32> to vector<16x16xf32>
    %cst_16 = arith.constant 5.000000e-01 : f32
    %20 = vector.broadcast %cst_16 : f32 to vector<16x16xf32>
    %21 = arith.mulf %20, %19 : vector<16x16xf32>
    %22 = math.exp %21 : vector<16x16xf32>
    %c0_17 = arith.constant 0 : index
    %c0_18 = arith.constant 0 : index
    %23 = vector.load %arg3[%c0_17, %c0_18] : memref<16x16xf32, #tpu.memory_space<vmem>>, vector<16x16xf32>
    %24 = arith.mulf %23, %22 : vector<16x16xf32>
    %25 = arith.addf %18, %24 : vector<16x16xf32>
    %26 = arith.truncf %25 : vector<16x16xf32> to vector<16x16xbf16>
    %c0_19 = arith.constant 0 : index
    %c0_20 = arith.constant 0 : index
    %27 = vector.load %arg9[%c0_19, %c0_20] : memref<16x128xbf16, #tpu.memory_space<vmem>>, vector<16x128xbf16>
    %cst_21 = arith.constant dense<0.000000e+00> : vector<16x128xf32>
    %28 = tpu.matmul %26, %27, %cst_21 {dimension_numbers = #tpu.dot_dimension_numbers<[1], [0], [0], [1], [0, 0, 1, 1], [], []>} : vector<16x16xbf16>, vector<16x128xbf16>, vector<16x128xf32> -> vector<16x128xf32>
    %c0_22 = arith.constant 0 : index
    %c0_23 = arith.constant 0 : index
    %29 = vector.load %arg10[%c0_22, %c0_23] : memref<10x128xbf16, #tpu.memory_space<vmem>>, vector<10x128xbf16>
    %cst_24 = arith.constant dense<0.000000e+00> : vector<16x128xf32>
    %30 = tpu.matmul %0, %29, %cst_24 {dimension_numbers = #tpu.dot_dimension_numbers<[1], [0], [0], [1], [0, 0, 1, 1], [], []>} : vector<16x10xbf16>, vector<10x128xbf16>, vector<16x128xf32> -> vector<16x128xf32>
    %31 = arith.addf %28, %30 : vector<16x128xf32>
    %c0_25 = arith.constant 0 : index
    %c0_26 = arith.constant 0 : index
    %32 = vector.load %arg11[%c0_25, %c0_26] : memref<1x128xf32, #tpu.memory_space<vmem>>, vector<1x128xf32>
    %33 = vector.broadcast %32 : vector<1x128xf32> to vector<16x128xf32>
    %34 = arith.addf %31, %33 : vector<16x128xf32>
    %cst_27 = arith.constant 0.000000e+00 : f32
    %35 = vector.broadcast %cst_27 : f32 to vector<16x128xf32>
    %36 = arith.maximumf %34, %35 : vector<16x128xf32>
    %37 = arith.truncf %36 : vector<16x128xf32> to vector<16x128xbf16>
    %c0_28 = arith.constant 0 : index
    %c0_29 = arith.constant 0 : index
    %38 = vector.load %arg12[%c0_28, %c0_29] : memref<128x256xbf16, #tpu.memory_space<vmem>>, vector<128x256xbf16>
    %cst_30 = arith.constant dense<0.000000e+00> : vector<16x256xf32>
    %39 = tpu.matmul %37, %38, %cst_30 {dimension_numbers = #tpu.dot_dimension_numbers<[1], [0], [0], [1], [0, 0, 1, 1], [], []>} : vector<16x128xbf16>, vector<128x256xbf16>, vector<16x256xf32> -> vector<16x256xf32>
    %c0_31 = arith.constant 0 : index
    %c0_32 = arith.constant 0 : index
    %40 = vector.load %arg13[%c0_31, %c0_32] : memref<1x256xf32, #tpu.memory_space<vmem>>, vector<1x256xf32>
    %41 = vector.broadcast %40 : vector<1x256xf32> to vector<16x256xf32>
    %42 = arith.addf %39, %41 : vector<16x256xf32>
    %43 = arith.negf %42 : vector<16x256xf32>
    %44 = math.exp %43 : vector<16x256xf32>
    %cst_33 = arith.constant 1.000000e+00 : f32
    %45 = vector.broadcast %cst_33 : f32 to vector<16x256xf32>
    %46 = arith.addf %45, %44 : vector<16x256xf32>
    %47 = arith.divf %45, %46 : vector<16x256xf32>
    %48 = arith.truncf %47 : vector<16x256xf32> to vector<16x256xbf16>
    %c0_34 = arith.constant 0 : index
    %c0_35 = arith.constant 0 : index
    %49 = vector.load %arg14[%c0_34, %c0_35] : memref<16x256xbf16, #tpu.memory_space<vmem>>, vector<16x256xbf16>
    tpu.vector_store %arg14[%c0_34, %c0_35], %48 {strides = array<i32>} : memref<16x256xbf16, #tpu.memory_space<vmem>>, vector<16x256xbf16>,
    %50 = tpu.concatenate %18, %19, %25 in 1 : vector<16x16xf32>, vector<16x16xf32>, vector<16x16xf32> -> vector<16x48xf32>
    %cst_36 = arith.constant 0.000000e+00 : f32
    %51 = vector.broadcast %cst_36 : f32 to vector<16x80xf32>
    %52 = tpu.concatenate %50, %51 in 1 : vector<16x48xf32>, vector<16x80xf32> -> vector<16x128xf32>
    %53 = arith.truncf %52 : vector<16x128xf32> to vector<16x128xbf16>
    %c0_37 = arith.constant 0 : index
    %c0_38 = arith.constant 0 : index
    %54 = vector.load %arg15[%c0_37, %c0_38] : memref<16x128xbf16, #tpu.memory_space<vmem>>, vector<16x128xbf16>
    tpu.vector_store %arg15[%c0_37, %c0_38], %53 {strides = array<i32>} : memref<16x128xbf16, #tpu.memory_space<vmem>>, vector<16x128xbf16>,
    return
  }
  func.func @transform_0(%arg0: i32) -> (i32, i32) {
    %c0_i32 = arith.constant 0 : i32
    %c0_i32_0 = arith.constant 0 : i32
    return %arg0, %c0_i32 : i32, i32
  }
  func.func @transform_1(%arg0: i32) -> (i32, i32) {
    %c0_i32 = arith.constant 0 : i32
    %c0_i32_0 = arith.constant 0 : i32
    return %arg0, %c0_i32 : i32, i32
  }
  func.func @transform_2(%arg0: i32) -> (i32, i32) {
    %c0_i32 = arith.constant 0 : i32
    %c0_i32_0 = arith.constant 0 : i32
    return %arg0, %c0_i32 : i32, i32
  }
  func.func @transform_3(%arg0: i32) -> (i32, i32) {
    %c0_i32 = arith.constant 0 : i32
    %c0_i32_0 = arith.constant 0 : i32
    %c0_i32_1 = arith.constant 0 : i32
    return %c0_i32, %c0_i32_0 : i32, i32
  }
  func.func @transform_4(%arg0: i32) -> (i32, i32) {
    %c0_i32 = arith.constant 0 : i32
    %c0_i32_0 = arith.constant 0 : i32
    %c0_i32_1 = arith.constant 0 : i32
    return %c0_i32, %c0_i32_0 : i32, i32
  }
  func.func @transform_5(%arg0: i32) -> (i32, i32) {
    %c0_i32 = arith.constant 0 : i32
    %c0_i32_0 = arith.constant 0 : i32
    %c0_i32_1 = arith.constant 0 : i32
    return %c0_i32, %c0_i32_0 : i32, i32
  }
  func.func @transform_6(%arg0: i32) -> (i32, i32) {
    %c0_i32 = arith.constant 0 : i32
    %c0_i32_0 = arith.constant 0 : i32
    %c0_i32_1 = arith.constant 0 : i32
    return %c0_i32, %c0_i32_0 : i32, i32
  }
  func.func @transform_7(%arg0: i32) -> (i32, i32) {
    %c0_i32 = arith.constant 0 : i32
    %c0_i32_0 = arith.constant 0 : i32
    %c0_i32_1 = arith.constant 0 : i32
    return %c0_i32, %c0_i32_0 : i32, i32
  }
  func.func @transform_8(%arg0: i32) -> (i32, i32) {
    %c0_i32 = arith.constant 0 : i32
    %c0_i32_0 = arith.constant 0 : i32
    %c0_i32_1 = arith.constant 0 : i32
    return %c0_i32, %c0_i32_0 : i32, i32
  }
  func.func @transform_9(%arg0: i32) -> (i32, i32) {
    %c0_i32 = arith.constant 0 : i32
    %c0_i32_0 = arith.constant 0 : i32
    %c0_i32_1 = arith.constant 0 : i32
    return %c0_i32, %c0_i32_0 : i32, i32
  }
  func.func @transform_10(%arg0: i32) -> (i32, i32) {
    %c0_i32 = arith.constant 0 : i32
    %c0_i32_0 = arith.constant 0 : i32
    %c0_i32_1 = arith.constant 0 : i32
    return %c0_i32, %c0_i32_0 : i32, i32
  }
  func.func @transform_11(%arg0: i32) -> (i32, i32) {
    %c0_i32 = arith.constant 0 : i32
    %c0_i32_0 = arith.constant 0 : i32
    %c0_i32_1 = arith.constant 0 : i32
    return %c0_i32, %c0_i32_0 : i32, i32
  }
  func.func @transform_12(%arg0: i32) -> (i32, i32) {
    %c0_i32 = arith.constant 0 : i32
    %c0_i32_0 = arith.constant 0 : i32
    %c0_i32_1 = arith.constant 0 : i32
    return %c0_i32, %c0_i32_0 : i32, i32
  }
  func.func @transform_13(%arg0: i32) -> (i32, i32) {
    %c0_i32 = arith.constant 0 : i32
    %c0_i32_0 = arith.constant 0 : i32
    return %arg0, %c0_i32 : i32, i32
  }
  func.func @transform_14(%arg0: i32) -> (i32, i32) {
    %c0_i32 = arith.constant 0 : i32
    %c0_i32_0 = arith.constant 0 : i32
    return %arg0, %c0_i32 : i32, i32
  }
}

</mosaic_0001>

<llo_original>
// kernel: tpu_custom_call.1
$region0: #{tpu_custom_call.1}
  #allocation0 [shape = 'u32[]', space=smem, size = 0x4, offset = 0x4, fixed_abs, tag = 'smem constant byte address 0x4 - core index']
  #allocation1 [shape = 'u32[144,128]{1,0:T(1,128)}', space=vmem, size = 0x12000, scoped, tag = 'internal scratch']
  %s0 = inlined_call_operand.vmem [shape: bf16[32,256], index: 0, kind: input, shape index: {}]
  %s1 = inlined_call_operand.vmem [shape: bf16[32,10], index: 1, kind: input, shape index: {}]
  %s2 = inlined_call_operand.vmem [shape: f32[32,16], index: 2, kind: input, shape index: {}]
  %s3 = inlined_call_operand.vmem [shape: bf16[256,128], index: 3, kind: input, shape index: {}]
  %s4 = inlined_call_operand.hbm [shape: bf16[10,128], index: 4, kind: input, shape index: {}]
  %s5 = inlined_call_operand.hbm [shape: f32[1,128], index: 5, kind: input, shape index: {}]
  %s6 = inlined_call_operand.vmem [shape: bf16[128,32], index: 6, kind: input, shape index: {}]
  %s7 = inlined_call_operand.hbm [shape: f32[1,32], index: 7, kind: input, shape index: {}]
  %s8 = inlined_call_operand.vmem [shape: bf16[16,128], index: 8, kind: input, shape index: {}]
  %s9 = inlined_call_operand.vmem [shape: bf16[10,128], index: 9, kind: input, shape index: {}]
  %s10 = inlined_call_operand.vmem [shape: f32[1,128], index: 10, kind: input, shape index: {}]
  %s11 = inlined_call_operand.hbm [shape: bf16[128,256], index: 11, kind: input, shape index: {}]
  %s12 = inlined_call_operand.vmem [shape: f32[1,256], index: 12, kind: input, shape index: {}]
  %s13 = inlined_call_operand.hbm [shape: bf16[32,256], index: 13, kind: output, shape index: {0}]
  %s14 = inlined_call_operand.hbm [shape: bf16[32,128], index: 14, kind: output, shape index: {1}]
  %15 = xla_tuple %s13, %s14
  %s16 = sld [smem:[#allocation0]]
  $region109: #{tpu_custom_call.1} parent=0
    _
  %s18 = ssub.s32 1, %s16
  %s19 = scalar_select 0, %s18, %s16
  $region1: #{tpu_custom_call.1} parent=0
    #allocation2 [shape = 'u8[4096]{0}', space=vmem, size = 0x1000, scoped, tag = 'input window, operand 4, single buffered']
    #allocation3 [shape = 's32[2]{0}', space=sflag, size = 0x8, scoped, tag = 'scoped memory for tpu_custom_call.1']
    #allocation4 [shape = 's32[2]{0}', space=sflag, size = 0x8, scoped, tag = 'scoped memory for tpu_custom_call.1']
    #allocation5 [shape = 'u8[512]{0}', space=vmem, size = 0x400, scoped, tag = 'input window, operand 5, single buffered']
    #allocation6 [shape = 's32[1]{0}', space=sflag, size = 0x4, scoped, tag = 'scoped memory for tpu_custom_call.1']
    #allocation7 [shape = 'u8[512]{0}', space=vmem, size = 0x400, scoped, tag = 'input window, operand 7, single buffered']
    #allocation8 [shape = 'u8[65536]{0}', space=vmem, size = 0x10000, scoped, tag = 'input window, operand 11, single buffered']
    #allocation9 [shape = 's32[1]{0}', space=sflag, size = 0x4, scoped, tag = 'scoped memory for tpu_custom_call.1']
    #allocation10 [shape = 'u8[16384]{0}', space=vmem, size = 0x4000, scoped, tag = 'output window, operand 0']
    #allocation11 [shape = 'u8[8192]{0}', space=vmem, size = 0x2000, scoped, tag = 'output window, operand 1']
    #allocation12 [shape = 's32[2]{0}', space=sflag, size = 0x8, scoped, tag = 'scoped memory for tpu_custom_call.1']
    %20 = vsyncpa [#allocation3], 0
    %21 = vsyncpa [#allocation6], 0
    %22 = vsyncpa [#allocation9], 0
    %23 = vsyncpa [#allocation4], 0
    %s24 = scalar_lea.sflag [#allocation4], 1
    %25 = vsyncpa %s24, 0
    %26 = vsyncpa [#allocation12], 0
    %s27 = scalar_lea.sflag [#allocation12], 1
    %28 = vsyncpa %s27, 0
    loop: start=0, step=1, limit=4
    $region2: #{tpu_custom_call.1} parent=1 // loop_pre_header
      _
    $region3: #{tpu_custom_call.1} parent=1 // loop_header
      %s30 = sphi 0, %s34
      %p31 = scmp.ge.s32.totalorder %s30, 4
      %s40 = sphi 0, %s42
      %s43 = sphi 0, %s40
      %s44 = sphi 0, %s43
      %s60 = sphi 0, %s44
      %s66 = sphi 0, %s68
      %s69 = sphi 0, %s66
      %s70 = sphi 0, %s69
      %s86 = sphi 0, %s70
      %s92 = sphi 0, %s94
      %s95 = sphi 0, %s92
      %s96 = sphi 0, %s95
      %s112 = sphi 0, %s96
      %s116 = sphi 0, %s116
      %s118 = sphi 0, %s116
      %s119 = sphi 0, %s118
      %s133 = sphi 0, %s119
      %s137 = sphi 0, %s137
      %s139 = sphi 0, %s137
      %s140 = sphi 0, %s139
      %s154 = sphi 0, %s140
      %s158 = sphi 0, %s158
      %s160 = sphi 0, %s158
      %s161 = sphi 0, %s160
      %s175 = sphi 0, %s161
      %s179 = sphi 0, %s179
      %s181 = sphi 0, %s179
      %s182 = sphi 0, %s181
      %s196 = sphi 0, %s182
      %s200 = sphi 0, %s200
      %s202 = sphi 0, %s200
      %s203 = sphi 0, %s202
      %s217 = sphi 0, %s203
      %s221 = sphi 0, %s221
      %s223 = sphi 0, %s221
      %s224 = sphi 0, %s223
      %s238 = sphi 0, %s224
      %s242 = sphi 0, %s242
      %s244 = sphi 0, %s242
      %s245 = sphi 0, %s244
      %s259 = sphi 0, %s245
      %s263 = sphi 0, %s263
      %s265 = sphi 0, %s263
      %s266 = sphi 0, %s265
      %s280 = sphi 0, %s266
      %s284 = sphi 0, %s284
      %s286 = sphi 0, %s284
      %s287 = sphi 0, %s286
      %s301 = sphi 0, %s287
      %s305 = sphi 0, %s305
      %s307 = sphi 0, %s305
      %s308 = sphi 0, %s307
      %s322 = sphi 0, %s308
      %s328 = sphi 0, %s330
      %s331 = sphi 0, %s328
      %s332 = sphi 0, %s331
      %s348 = sphi 0, %s332
      %s354 = sphi 0, %s356
      %s357 = sphi 0, %s354
      %s358 = sphi 0, %s357
      %s374 = sphi 0, %s358
    $region4: #{tpu_custom_call.1} parent=1 // loop_header_branch
      %33 = sbr.rel (%p31) target = $region8
    $region5: #{tpu_custom_call.1} parent=1 // loop_body
      %s35 = ssub.s32 %s30, 1
      %s36 = ssub.s32 %s30, 2
      %s37 = sadd.s32 %s30, 1
      %s38 = ssub.s32 %s30, %s37
      %p39 = scmp.eq.s32.totalorder %s38, 0
      %s41 = sadd.s32 %s40, 1
      %s42 = scalar_select %p39, %s40, %s41
      %p45 = pneg %p39
      %p46 = scmp.eq.s32.totalorder %s30, 1
      %p47 = por %p45, %p46
      %p48 = scmp.ne.s32.totalorder %s40, %s43
      %p49 = scmp.eq.s32.totalorder %s30, 0
      %p50 = por %p48, %p49
      %p51 = scmp.ne.s32.totalorder %s40, %s43
      %p52 = scmp.eq.s32.totalorder %s35, 1
      %p53 = por %p51, %p52
      %p54 = scmp.ne.s32.totalorder %s43, %s44
      %p55 = scmp.eq.s32.totalorder %s35, 0
      %p56 = por %p54, %p55
      %p57 = scmp.ne.s32.totalorder %s43, %s44
      %p58 = scmp.eq.s32.totalorder %s36, 1
      %p59 = por %p57, %p58
      %p61 = scmp.ne.s32.totalorder %s44, %s60
      %p62 = scmp.eq.s32.totalorder %s36, 0
      %p63 = por %p61, %p62
      %s64 = ssub.s32 %s30, %s37
      %p65 = scmp.eq.s32.totalorder %s64, 0
      %s67 = sadd.s32 %s66, 1
      %s68 = scalar_select %p65, %s66, %s67
      %p71 = pneg %p65
      %p72 = scmp.eq.s32.totalorder %s30, 1
      %p73 = por %p71, %p72
      %p74 = scmp.ne.s32.totalorder %s66, %s69
      %p75 = scmp.eq.s32.totalorder %s30, 0
      %p76 = por %p74, %p75
      %p77 = scmp.ne.s32.totalorder %s66, %s69
      %p78 = scmp.eq.s32.totalorder %s35, 1
      %p79 = por %p77, %p78
      %p80 = scmp.ne.s32.totalorder %s69, %s70
      %p81 = scmp.eq.s32.totalorder %s35, 0
      %p82 = por %p80, %p81
      %p83 = scmp.ne.s32.totalorder %s69, %s70
      %p84 = scmp.eq.s32.totalorder %s36, 1
      %p85 = por %p83, %p84
      %p87 = scmp.ne.s32.totalorder %s70, %s86
      %p88 = scmp.eq.s32.totalorder %s36, 0
      %p89 = por %p87, %p88
      %s90 = ssub.s32 %s30, %s37
      %p91 = scmp.eq.s32.totalorder %s90, 0
      %s93 = sadd.s32 %s92, 1
      %s94 = scalar_select %p91, %s92, %s93
      %p97 = pneg %p91
      %p98 = scmp.eq.s32.totalorder %s30, 1
      %p99 = por %p97, %p98
      %p100 = scmp.ne.s32.totalorder %s92, %s95
      %p101 = scmp.eq.s32.totalorder %s30, 0
      %p102 = por %p100, %p101
      %p103 = scmp.ne.s32.totalorder %s92, %s95
      %p104 = scmp.eq.s32.totalorder %s35, 1
      %p105 = por %p103, %p104
      %p106 = scmp.ne.s32.totalorder %s95, %s96
      %p107 = scmp.eq.s32.totalorder %s35, 0
      %p108 = por %p106, %p107
      %p109 = scmp.ne.s32.totalorder %s95, %s96
      %p110 = scmp.eq.s32.totalorder %s36, 1
      %p111 = por %p109, %p110
      %p113 = scmp.ne.s32.totalorder %s96, %s112
      %p114 = scmp.eq.s32.totalorder %s36, 0
      %p115 = por %p113, %p114
      %s117 = sadd.s32 %s116, 1
      %p120 = scmp.eq.s32.totalorder %s30, 1
      %p121 = scmp.ne.s32.totalorder %s116, %s118
      %p122 = scmp.eq.s32.totalorder %s30, 0
      %p123 = por %p121, %p122
      %p124 = scmp.ne.s32.totalorder %s116, %s118
      %p125 = scmp.eq.s32.totalorder %s35, 1
      %p126 = por %p124, %p125
      %p127 = scmp.ne.s32.totalorder %s118, %s119
      %p128 = scmp.eq.s32.totalorder %s35, 0
      %p129 = por %p127, %p128
      %p130 = scmp.ne.s32.totalorder %s118, %s119
      %p131 = scmp.eq.s32.totalorder %s36, 1
      %p132 = por %p130, %p131
      %p134 = scmp.ne.s32.totalorder %s119, %s133
      %p135 = scmp.eq.s32.totalorder %s36, 0
      %p136 = por %p134, %p135
      %s138 = sadd.s32 %s137, 1
      %p141 = scmp.eq.s32.totalorder %s30, 1
      %p142 = scmp.ne.s32.totalorder %s137, %s139
      %p143 = scmp.eq.s32.totalorder %s30, 0
      %p144 = por %p142, %p143
      %p145 = scmp.ne.s32.totalorder %s137, %s139
      %p146 = scmp.eq.s32.totalorder %s35, 1
      %p147 = por %p145, %p146
      %p148 = scmp.ne.s32.totalorder %s139, %s140
      %p149 = scmp.eq.s32.totalorder %s35, 0
      %p150 = por %p148, %p149
      %p151 = scmp.ne.s32.totalorder %s139, %s140
      %p152 = scmp.eq.s32.totalorder %s36, 1
      %p153 = por %p151, %p152
      %p155 = scmp.ne.s32.totalorder %s140, %s154
      %p156 = scmp.eq.s32.totalorder %s36, 0
      %p157 = por %p155, %p156
      %s159 = sadd.s32 %s158, 1
      %p162 = scmp.eq.s32.totalorder %s30, 1
      %p163 = scmp.ne.s32.totalorder %s158, %s160
      %p164 = scmp.eq.s32.totalorder %s30, 0
      %p165 = por %p163, %p164
      %p166 = scmp.ne.s32.totalorder %s158, %s160
      %p167 = scmp.eq.s32.totalorder %s35, 1
      %p168 = por %p166, %p167
      %p169 = scmp.ne.s32.totalorder %s160, %s161
      %p170 = scmp.eq.s32.totalorder %s35, 0
      %p171 = por %p169, %p170
      %p172 = scmp.ne.s32.totalorder %s160, %s161
      %p173 = scmp.eq.s32.totalorder %s36, 1
      %p174 = por %p172, %p173
      %p176 = scmp.ne.s32.totalorder %s161, %s175
      %p177 = scmp.eq.s32.totalorder %s36, 0
      %p178 = por %p176, %p177
      %s180 = sadd.s32 %s179, 1
      %p183 = scmp.eq.s32.totalorder %s30, 1
      %p184 = scmp.ne.s32.totalorder %s179, %s181
      %p185 = scmp.eq.s32.totalorder %s30, 0
      %p186 = por %p184, %p185
      %p187 = scmp.ne.s32.totalorder %s179, %s181
      %p188 = scmp.eq.s32.totalorder %s35, 1
      %p189 = por %p187, %p188
      %p190 = scmp.ne.s32.totalorder %s181, %s182
      %p191 = scmp.eq.s32.totalorder %s35, 0
      %p192 = por %p190, %p191
      %p193 = scmp.ne.s32.totalorder %s181, %s182
      %p194 = scmp.eq.s32.totalorder %s36, 1
      %p195 = por %p193, %p194
      %p197 = scmp.ne.s32.totalorder %s182, %s196
      %p198 = scmp.eq.s32.totalorder %s36, 0
      %p199 = por %p197, %p198
      %s201 = sadd.s32 %s200, 1
      %p204 = scmp.eq.s32.totalorder %s30, 1
      %p205 = scmp.ne.s32.totalorder %s200, %s202
      %p206 = scmp.eq.s32.totalorder %s30, 0
      %p207 = por %p205, %p206
      %p208 = scmp.ne.s32.totalorder %s200, %s202
      %p209 = scmp.eq.s32.totalorder %s35, 1
      %p210 = por %p208, %p209
      %p211 = scmp.ne.s32.totalorder %s202, %s203
      %p212 = scmp.eq.s32.totalorder %s35, 0
      %p213 = por %p211, %p212
      %p214 = scmp.ne.s32.totalorder %s202, %s203
      %p215 = scmp.eq.s32.totalorder %s36, 1
      %p216 = por %p214, %p215
      %p218 = scmp.ne.s32.totalorder %s203, %s217
      %p219 = scmp.eq.s32.totalorder %s36, 0
      %p220 = por %p218, %p219
      %s222 = sadd.s32 %s221, 1
      %p225 = scmp.eq.s32.totalorder %s30, 1
      %p226 = scmp.ne.s32.totalorder %s221, %s223
      %p227 = scmp.eq.s32.totalorder %s30, 0
      %p228 = por %p226, %p227
      %p229 = scmp.ne.s32.totalorder %s221, %s223
      %p230 = scmp.eq.s32.totalorder %s35, 1
      %p231 = por %p229, %p230
      %p232 = scmp.ne.s32.totalorder %s223, %s224
      %p233 = scmp.eq.s32.totalorder %s35, 0
      %p234 = por %p232, %p233
      %p235 = scmp.ne.s32.totalorder %s223, %s224
      %p236 = scmp.eq.s32.totalorder %s36, 1
      %p237 = por %p235, %p236
      %p239 = scmp.ne.s32.totalorder %s224, %s238
      %p240 = scmp.eq.s32.totalorder %s36, 0
      %p241 = por %p239, %p240
      %s243 = sadd.s32 %s242, 1
      %p246 = scmp.eq.s32.totalorder %s30, 1
      %p247 = scmp.ne.s32.totalorder %s242, %s244
      %p248 = scmp.eq.s32.totalorder %s30, 0
      %p249 = por %p247, %p248
      %p250 = scmp.ne.s32.totalorder %s242, %s244
      %p251 = scmp.eq.s32.totalorder %s35, 1
      %p252 = por %p250, %p251
      %p253 = scmp.ne.s32.totalorder %s244, %s245
      %p254 = scmp.eq.s32.totalorder %s35, 0
      %p255 = por %p253, %p254
      %p256 = scmp.ne.s32.totalorder %s244, %s245
      %p257 = scmp.eq.s32.totalorder %s36, 1
      %p258 = por %p256, %p257
      %p260 = scmp.ne.s32.totalorder %s245, %s259
      %p261 = scmp.eq.s32.totalorder %s36, 0
      %p262 = por %p260, %p261
      %s264 = sadd.s32 %s263, 1
      %p267 = scmp.eq.s32.totalorder %s30, 1
      %p268 = scmp.ne.s32.totalorder %s263, %s265
      %p269 = scmp.eq.s32.totalorder %s30, 0
      %p270 = por %p268, %p269
      %p271 = scmp.ne.s32.totalorder %s263, %s265
      %p272 = scmp.eq.s32.totalorder %s35, 1
      %p273 = por %p271, %p272
      %p274 = scmp.ne.s32.totalorder %s265, %s266
      %p275 = scmp.eq.s32.totalorder %s35, 0
      %p276 = por %p274, %p275
      %p277 = scmp.ne.s32.totalorder %s265, %s266
      %p278 = scmp.eq.s32.totalorder %s36, 1
      %p279 = por %p277, %p278
      %p281 = scmp.ne.s32.totalorder %s266, %s280
      %p282 = scmp.eq.s32.totalorder %s36, 0
      %p283 = por %p281, %p282
      %s285 = sadd.s32 %s284, 1
      %p288 = scmp.eq.s32.totalorder %s30, 1
      %p289 = scmp.ne.s32.totalorder %s284, %s286
      %p290 = scmp.eq.s32.totalorder %s30, 0
      %p291 = por %p289, %p290
      %p292 = scmp.ne.s32.totalorder %s284, %s286
      %p293 = scmp.eq.s32.totalorder %s35, 1
      %p294 = por %p292, %p293
      %p295 = scmp.ne.s32.totalorder %s286, %s287
      %p296 = scmp.eq.s32.totalorder %s35, 0
      %p297 = por %p295, %p296
      %p298 = scmp.ne.s32.totalorder %s286, %s287
      %p299 = scmp.eq.s32.totalorder %s36, 1
      %p300 = por %p298, %p299
      %p302 = scmp.ne.s32.totalorder %s287, %s301
      %p303 = scmp.eq.s32.totalorder %s36, 0
      %p304 = por %p302, %p303
      %s306 = sadd.s32 %s305, 1
      %p309 = scmp.eq.s32.totalorder %s30, 1
      %p310 = scmp.ne.s32.totalorder %s305, %s307
      %p311 = scmp.eq.s32.totalorder %s30, 0
      %p312 = por %p310, %p311
      %p313 = scmp.ne.s32.totalorder %s305, %s307
      %p314 = scmp.eq.s32.totalorder %s35, 1
      %p315 = por %p313, %p314
      %p316 = scmp.ne.s32.totalorder %s307, %s308
      %p317 = scmp.eq.s32.totalorder %s35, 0
      %p318 = por %p316, %p317
      %p319 = scmp.ne.s32.totalorder %s307, %s308
      %p320 = scmp.eq.s32.totalorder %s36, 1
      %p321 = por %p319, %p320
      %p323 = scmp.ne.s32.totalorder %s308, %s322
      %p324 = scmp.eq.s32.totalorder %s36, 0
      %p325 = por %p323, %p324
      %s326 = ssub.s32 %s30, %s37
      %p327 = scmp.eq.s32.totalorder %s326, 0
      %s329 = sadd.s32 %s328, 1
      %s330 = scalar_select %p327, %s328, %s329
      %p333 = pneg %p327
      %p334 = scmp.eq.s32.totalorder %s30, 1
      %p335 = por %p333, %p334
      %p336 = scmp.ne.s32.totalorder %s328, %s331
      %p337 = scmp.eq.s32.totalorder %s30, 0
      %p338 = por %p336, %p337
      %p339 = scmp.ne.s32.totalorder %s328, %s331
      %p340 = scmp.eq.s32.totalorder %s35, 1
      %p341 = por %p339, %p340
      %p342 = scmp.ne.s32.totalorder %s331, %s332
      %p343 = scmp.eq.s32.totalorder %s35, 0
      %p344 = por %p342, %p343
      %p345 = scmp.ne.s32.totalorder %s331, %s332
      %p346 = scmp.eq.s32.totalorder %s36, 1
      %p347 = por %p345, %p346
      %p349 = scmp.ne.s32.totalorder %s332, %s348
      %p350 = scmp.eq.s32.totalorder %s36, 0
      %p351 = por %p349, %p350
      %s352 = ssub.s32 %s30, %s37
      %p353 = scmp.eq.s32.totalorder %s352, 0
      %s355 = sadd.s32 %s354, 1
      %s356 = scalar_select %p353, %s354, %s355
      %p359 = pneg %p353
      %p360 = scmp.eq.s32.totalorder %s30, 1
      %p361 = por %p359, %p360
      %p362 = scmp.ne.s32.totalorder %s354, %s357
      %p363 = scmp.eq.s32.totalorder %s30, 0
      %p364 = por %p362, %p363
      %p365 = scmp.ne.s32.totalorder %s354, %s357
      %p366 = scmp.eq.s32.totalorder %s35, 1
      %p367 = por %p365, %p366
      %p368 = scmp.ne.s32.totalorder %s357, %s358
      %p369 = scmp.eq.s32.totalorder %s35, 0
      %p370 = por %p368, %p369
      %p371 = scmp.ne.s32.totalorder %s357, %s358
      %p372 = scmp.eq.s32.totalorder %s36, 1
      %p373 = por %p371, %p372
      %p375 = scmp.ne.s32.totalorder %s358, %s374
      %p376 = scmp.eq.s32.totalorder %s36, 0
      %p377 = por %p375, %p376
      %p378 = scmp.le.s32.totalorder 1, %s30
      %p379 = scmp.lt.s32.totalorder %s30, 3
      %p380 = pnand %p378, %p379
      %p381 = pneg %p380
      // Predicated region
      $region9: #{tpu_custom_call.1} parent=5 // pred_check
        _
      $region10: #{tpu_custom_call.1} parent=5 // pred_check_branch
        %383 = sbr.rel (%p380) target = $region12
      $region11: #{tpu_custom_call.1} parent=5 // pred_region
        %s384 = ssub.s32 %s30, 1
        // Predicated region
        $region13: #{tpu_custom_call.1} parent=11 // pred_check
          %p385 = pneg %p129
        $region14: #{tpu_custom_call.1} parent=11 // pred_check_branch
          %387 = sbr.rel (%p385) target = $region16
        $region15: #{tpu_custom_call.1} parent=11 // pred_region
          _
        $region16: #{tpu_custom_call.1} parent=11 // pred_fallthru
          _
        // Predicated region
        $region17: #{tpu_custom_call.1} parent=11 // pred_check
          %p388 = pneg %p150
        $region18: #{tpu_custom_call.1} parent=11 // pred_check_branch
          %390 = sbr.rel (%p388) target = $region20
        $region19: #{tpu_custom_call.1} parent=11 // pred_region
          %s392 = ssub.s32 128, 128
          %393 = vsyncadd [#allocation3], %s392
          %s394 = sshll.u32 [#allocation2], 4
          %s395 = int_to_ptr.vmem [resolvable:$true] %s394
          %400 = dma.hbm_to_vmem [thread:$0]  %s4, 128, %s395, [#allocation3], 64, 64, 4
        $region20: #{tpu_custom_call.1} parent=11 // pred_fallthru
          _
        // Predicated region
        $region21: #{tpu_custom_call.1} parent=11 // pred_check
          %p401 = pneg %p171
        $region22: #{tpu_custom_call.1} parent=11 // pred_check_branch
          %403 = sbr.rel (%p401) target = $region24
        $region23: #{tpu_custom_call.1} parent=11 // pred_region
          %s405 = ssub.s32 16, 16
          %406 = vsyncadd [#allocation6], %s405
          %s408 = sshll.u32 [#allocation5], 4
          %s409 = int_to_ptr.vmem [resolvable:$true] %s408
          %411 = dma.hbm_to_vmem [thread:$0]  %s5, 16, %s409, [#allocation6]
        $region24: #{tpu_custom_call.1} parent=11 // pred_fallthru
          _
        // Predicated region
        $region25: #{tpu_custom_call.1} parent=11 // pred_check
          %p412 = pneg %p192
        $region26: #{tpu_custom_call.1} parent=11 // pred_check_branch
          %414 = sbr.rel (%p412) target = $region28
        $region27: #{tpu_custom_call.1} parent=11 // pred_region
          _
        $region28: #{tpu_custom_call.1} parent=11 // pred_fallthru
          _
        // Predicated region
        $region29: #{tpu_custom_call.1} parent=11 // pred_check
          %p415 = pneg %p213
        $region30: #{tpu_custom_call.1} parent=11 // pred_check_branch
          %417 = sbr.rel (%p415) target = $region32
        $region31: #{tpu_custom_call.1} parent=11 // pred_region
          %s419 = ssub.s32 16, 16
          %420 = vsyncadd [#allocation6], %s419
          %s422 = sshll.u32 [#allocation7], 4
          %s423 = int_to_ptr.vmem [resolvable:$true] %s422
          %425 = dma.hbm_to_vmem [thread:$0]  %s7, 16, %s423, [#allocation6]
        $region32: #{tpu_custom_call.1} parent=11 // pred_fallthru
          _
        // Predicated region
        $region33: #{tpu_custom_call.1} parent=11 // pred_check
          %p426 = pneg %p234
        $region34: #{tpu_custom_call.1} parent=11 // pred_check_branch
          %428 = sbr.rel (%p426) target = $region36
        $region35: #{tpu_custom_call.1} parent=11 // pred_region
          _
        $region36: #{tpu_custom_call.1} parent=11 // pred_fallthru
          _
        // Predicated region
        $region37: #{tpu_custom_call.1} parent=11 // pred_check
          %p429 = pneg %p255
        $region38: #{tpu_custom_call.1} parent=11 // pred_check_branch
          %431 = sbr.rel (%p429) target = $region40
        $region39: #{tpu_custom_call.1} parent=11 // pred_region
          _
        $region40: #{tpu_custom_call.1} parent=11 // pred_fallthru
          _
        // Predicated region
        $region41: #{tpu_custom_call.1} parent=11 // pred_check
          %p432 = pneg %p276
        $region42: #{tpu_custom_call.1} parent=11 // pred_check_branch
          %434 = sbr.rel (%p432) target = $region44
        $region43: #{tpu_custom_call.1} parent=11 // pred_region
          _
        $region44: #{tpu_custom_call.1} parent=11 // pred_fallthru
          _
        // Predicated region
        $region45: #{tpu_custom_call.1} parent=11 // pred_check
          %p435 = pneg %p297
        $region46: #{tpu_custom_call.1} parent=11 // pred_check_branch
          %437 = sbr.rel (%p435) target = $region48
        $region47: #{tpu_custom_call.1} parent=11 // pred_region
          %s439 = ssub.s32 2048, 2048
          %440 = vsyncadd [#allocation9], %s439
          %s441 = sshll.u32 [#allocation8], 4
          %s442 = int_to_ptr.vmem [resolvable:$true] %s441
          %447 = dma.hbm_to_vmem [thread:$0]  %s11, 2048, %s442, [#allocation9], 128, 128, 8
        $region48: #{tpu_custom_call.1} parent=11 // pred_fallthru
          _
        // Predicated region
        $region49: #{tpu_custom_call.1} parent=11 // pred_check
          %p448 = pneg %p318
        $region50: #{tpu_custom_call.1} parent=11 // pred_check_branch
          %450 = sbr.rel (%p448) target = $region52
        $region51: #{tpu_custom_call.1} parent=11 // pred_region
          _
        $region52: #{tpu_custom_call.1} parent=11 // pred_fallthru
          _
      $region12: #{tpu_custom_call.1} parent=5 // pred_fallthru
        _
      %p451 = scmp.lt.s32.totalorder %s30, 2
      // Predicated region
      $region53: #{tpu_custom_call.1} parent=5 // pred_check
        %p452 = pneg %p451
      $region54: #{tpu_custom_call.1} parent=5 // pred_check_branch
        %454 = sbr.rel (%p452) target = $region56
      $region55: #{tpu_custom_call.1} parent=5 // pred_region
        // Predicated region
        $region57: #{tpu_custom_call.1} parent=55 // pred_check
          %p455 = pneg %p50
        $region58: #{tpu_custom_call.1} parent=55 // pred_check_branch
          %457 = sbr.rel (%p455) target = $region60
        $region59: #{tpu_custom_call.1} parent=55 // pred_region
          %s458 = smul.u32 2, %s30
          %p459 = scmp.lt.s32.totalorder %s458, 3
          %s460 = scalar_select %p459, %s458, 3
          %s461 = smul.addr %s460, 2
          %s462 = smul.addr %s461, 4
          %s463 = scalar_lea.vmem %s0, %s462
          %s464 = smul.u32 2, %s30
        $region60: #{tpu_custom_call.1} parent=55 // pred_fallthru
          _
        // Predicated region
        $region61: #{tpu_custom_call.1} parent=55 // pred_check
          %p465 = pneg %p76
        $region62: #{tpu_custom_call.1} parent=55 // pred_check_branch
          %467 = sbr.rel (%p465) target = $region64
        $region63: #{tpu_custom_call.1} parent=55 // pred_region
          %s468 = smul.u32 2, %s30
          %p469 = scmp.lt.s32.totalorder %s468, 3
          %s470 = scalar_select %p469, %s468, 3
          %s471 = smul.addr %s470, 4
          %s472 = scalar_lea.vmem %s1, %s471
          %s473 = smul.u32 2, %s30
        $region64: #{tpu_custom_call.1} parent=55 // pred_fallthru
          _
        // Predicated region
        $region65: #{tpu_custom_call.1} parent=55 // pred_check
          %p474 = pneg %p102
        $region66: #{tpu_custom_call.1} parent=55 // pred_check_branch
          %476 = sbr.rel (%p474) target = $region68
        $region67: #{tpu_custom_call.1} parent=55 // pred_region
          %s477 = smul.u32 2, %s30
          %p478 = scmp.lt.s32.totalorder %s477, 3
          %s479 = scalar_select %p478, %s477, 3
          %s480 = smul.addr %s479, 8
          %s481 = scalar_lea.vmem %s2, %s480
          %s482 = smul.u32 2, %s30
        $region68: #{tpu_custom_call.1} parent=55 // pred_fallthru
          _
      $region56: #{tpu_custom_call.1} parent=5 // pred_fallthru
        _
      %p483 = scmp.le.s32.totalorder 1, %s30
      %p484 = scmp.lt.s32.totalorder %s30, 3
      %p485 = pnand %p483, %p484
      %p486 = pneg %p485
      // Predicated region
      $region69: #{tpu_custom_call.1} parent=5 // pred_check
        _
      $region70: #{tpu_custom_call.1} parent=5 // pred_check_branch
        %488 = sbr.rel (%p485) target = $region72
      $region71: #{tpu_custom_call.1} parent=5 // pred_region
        %s489 = ssub.s32 %s30, 1
        // Predicated region
        $region73: #{tpu_custom_call.1} parent=71 // pred_check
          %p490 = pneg %p150
        $region74: #{tpu_custom_call.1} parent=71 // pred_check_branch
          %492 = sbr.rel (%p490) target = $region76
        $region75: #{tpu_custom_call.1} parent=71 // pred_region
          %493 = dma.done [#allocation3], 128
        $region76: #{tpu_custom_call.1} parent=71 // pred_fallthru
          _
        // Predicated region
        $region77: #{tpu_custom_call.1} parent=71 // pred_check
          %p494 = pneg %p171
        $region78: #{tpu_custom_call.1} parent=71 // pred_check_branch
          %496 = sbr.rel (%p494) target = $region80
        $region79: #{tpu_custom_call.1} parent=71 // pred_region
          %497 = dma.done [#allocation6], 16
        $region80: #{tpu_custom_call.1} parent=71 // pred_fallthru
          _
        // Predicated region
        $region81: #{tpu_custom_call.1} parent=71 // pred_check
          %p498 = pneg %p213
        $region82: #{tpu_custom_call.1} parent=71 // pred_check_branch
          %500 = sbr.rel (%p498) target = $region84
        $region83: #{tpu_custom_call.1} parent=71 // pred_region
          %501 = dma.done [#allocation6], 16
        $region84: #{tpu_custom_call.1} parent=71 // pred_fallthru
          _
        // Predicated region
        $region85: #{tpu_custom_call.1} parent=71 // pred_check
          %p502 = pneg %p297
        $region86: #{tpu_custom_call.1} parent=71 // pred_check_branch
          %504 = sbr.rel (%p502) target = $region88
        $region87: #{tpu_custom_call.1} parent=71 // pred_region
          %505 = dma.done [#allocation9], 2048
        $region88: #{tpu_custom_call.1} parent=71 // pred_fallthru
          _
        %s506 = smul.u32 2, %s35
        %p507 = scmp.lt.s32.totalorder %s506, 3
        %s508 = scalar_select %p507, %s506, 3
        %s509 = smul.addr %s508, 2
        %s510 = smul.addr %s509, 4
        %s511 = scalar_lea.vmem %s0, %s510
        %p512 = pneg %p56
        %p513 = pneg %p53
        %s514 = smul.u32 2, %s35
        %p515 = scmp.lt.s32.totalorder %s514, 3
        %s516 = scalar_select %p515, %s514, 3
        %s517 = smul.addr %s516, 4
        %s518 = scalar_lea.vmem %s1, %s517
        %p519 = pneg %p82
        %p520 = pneg %p79
        %s521 = smul.u32 2, %s35
        %p522 = scmp.lt.s32.totalorder %s521, 3
        %s523 = scalar_select %p522, %s521, 3
        %s524 = smul.addr %s523, 8
        %s525 = scalar_lea.vmem %s2, %s524
        %p526 = pneg %p108
        %p527 = pneg %p105
        %p528 = pneg %p129
        %p529 = pneg %p126
        %p530 = pneg %p150
        %p531 = pneg %p147
        %p532 = pneg %p171
        %p533 = pneg %p168
        %p534 = pneg %p192
        %p535 = pneg %p189
        %p536 = pneg %p213
        %p537 = pneg %p210
        %p538 = pneg %p234
        %p539 = pneg %p231
        %p540 = pneg %p255
        %p541 = pneg %p252
        %p542 = pneg %p276
        %p543 = pneg %p273
        %p544 = pneg %p297
        %p545 = pneg %p294
        %p546 = pneg %p318
        %p547 = pneg %p315
        %p548 = pneg %p344
        %p549 = pneg %p341
        %s550 = sand.u32 %s331, 1
        %s551 = scalar_lea.sflag [#allocation4], %s550
        %s552 = sand.u32 %s331, 1
        %s553 = smul.addr %s552, 16
        %s554 = scalar_lea.vmem [#allocation10], %s553
        %p555 = pneg %p370
        %p556 = pneg %p367
        %s557 = sand.u32 %s357, 1
        %s558 = scalar_lea.sflag [#allocation12], %s557
        %s559 = sand.u32 %s357, 1
        %s560 = smul.addr %s559, 8
        %s561 = scalar_lea.vmem [#allocation11], %s560
        %s562 = smul.u32 2, %s35
        %p563 = scmp.lt.s32.totalorder %s562, 3
        %s564 = scalar_select %p563, %s562, 3
        %s565 = smul.addr %s564, 2
        %s566 = smul.addr %s565, 4
        %s567 = scalar_lea.vmem %s0, %s566
        %s568 = smul.u32 2, %s35
        %s569 = smul.u32 2, %s35
        %p570 = scmp.lt.s32.totalorder %s569, 3
        %s571 = scalar_select %p570, %s569, 3
        %s572 = smul.addr %s571, 4
        %s573 = scalar_lea.vmem %s1, %s572
        %s574 = smul.u32 2, %s35
        %s575 = smul.u32 2, %s35
        %p576 = scmp.lt.s32.totalorder %s575, 3
        %s577 = scalar_select %p576, %s575, 3
        %s578 = smul.addr %s577, 8
        %s579 = scalar_lea.vmem %s2, %s578
        %s580 = smul.u32 2, %s35
        %s581 = smul.u32 2, %s35
        %s582 = smul.u32 2, %s35
        %v584 = vld [vmem:[%s573] sm:$0xf]
        %v585 = vld [vmem:[%s573 + $0x4] sm:$0xf]
        %v586 = vld [vmem:[%s567] sm:$0xff]
        %v587 = vld [vmem:[%s567 + $0x8] sm:$0xff]
        %v588 = vld [vmem:[%s3] sm:$0xf]
        %v589 = vld [vmem:[%s3 + $0x4] sm:$0xf]
        %v590 = vld [vmem:[%s3 + $0x8] sm:$0xf]
        %v591 = vld [vmem:[%s3 + $0xc] sm:$0xf]
        %v592 = vld [vmem:[%s3 + $0x10] sm:$0xf]
        %v593 = vld [vmem:[%s3 + $0x14] sm:$0xf]
        %v594 = vld [vmem:[%s3 + $0x18] sm:$0xf]
        %v595 = vld [vmem:[%s3 + $0x1c] sm:$0xf]
        %v596 = vld [vmem:[%s3 + $0x20] sm:$0xf]
        %v597 = vld [vmem:[%s3 + $0x24] sm:$0xf]
        %v598 = vld [vmem:[%s3 + $0x28] sm:$0xf]
        %v599 = vld [vmem:[%s3 + $0x2c] sm:$0xf]
        %v600 = vld [vmem:[%s3 + $0x30] sm:$0xf]
        %v601 = vld [vmem:[%s3 + $0x34] sm:$0xf]
        %v602 = vld [vmem:[%s3 + $0x38] sm:$0xf]
        %v603 = vld [vmem:[%s3 + $0x3c] sm:$0xf]
        %v604 = vld [vmem:[%s3 + $0x40] sm:$0xf]
        %v605 = vld [vmem:[%s3 + $0x44] sm:$0xf]
        %v606 = vld [vmem:[%s3 + $0x48] sm:$0xf]
        %v607 = vld [vmem:[%s3 + $0x4c] sm:$0xf]
        %v608 = vld [vmem:[%s3 + $0x50] sm:$0xf]
        %v609 = vld [vmem:[%s3 + $0x54] sm:$0xf]
        %v610 = vld [vmem:[%s3 + $0x58] sm:$0xf]
        %v611 = vld [vmem:[%s3 + $0x5c] sm:$0xf]
        %v612 = vld [vmem:[%s3 + $0x60] sm:$0xf]
        %v613 = vld [vmem:[%s3 + $0x64] sm:$0xf]
        %v614 = vld [vmem:[%s3 + $0x68] sm:$0xf]
        %v615 = vld [vmem:[%s3 + $0x6c] sm:$0xf]
        %v616 = vld [vmem:[%s3 + $0x70] sm:$0xf]
        %v617 = vld [vmem:[%s3 + $0x74] sm:$0xf]
        %v618 = vld [vmem:[%s3 + $0x78] sm:$0xf]
        %v619 = vld [vmem:[%s3 + $0x7c] sm:$0xf]
        %v620 = vld [vmem:[#allocation2] sm:$0xf]
        %v621 = vld [vmem:[#allocation2 + $0x4] sm:$0x1]
        %v624 = vunpack.c.l.b16 %v584
        %v625 = vunpack.c.l.b16 %v585
        %v626 = vpack.c.b16 %v625, %v624
        %v629 = vunpack.c.l.b16 %v620
        %v630 = vunpack.c.l.b16 %v621
        %v631 = vpack.c.b16 %v630, %v629
        %vm632 = vcmask 80896
        %v634 = vsel %vm632, %v626, 0
        %vm636 = vcmask 1044480
        %v638 = vsel %vm636, %v631, 0
        %640 = vmatprep.subr.bf16.mxu0 0
        %641 = vmatpush1.bf16.msra.mxu0 %v638
        %642 = vmatprep.subr.bf16.mxu0 0
        %643 = vmatpush1.bf16.msra.mxu0 0
        %644 = vmatprep.subr.bf16.mxu0 0
        %645 = vmatpush1.bf16.msra.mxu0 0
        %646 = vmatprep.subr.bf16.mxu0 0
        %647 = vmatpush1.bf16.msra.mxu0 0
        %648 = vmatprep.subr.bf16.mxu0 0
        %649 = vmatpush1.bf16.msra.mxu0 0
        %650 = vmatprep.subr.bf16.mxu0 0
        %651 = vmatpush1.bf16.msra.mxu0 0
        %652 = vmatprep.subr.bf16.mxu0 0
        %653 = vmatpush1.bf16.msra.mxu0 0
        %654 = vmatprep.subr.bf16.mxu0 0
        %655 = vmatpush1.bf16.msra.mxu0 0
        %656 = vmatprep.subr.bf16.mxu0 0
        %657 = vmatpush1.bf16.msra.mxu0 0
        %658 = vmatprep.subr.bf16.mxu0 0
        %659 = vmatpush1.bf16.msra.mxu0 0
        %660 = vmatprep.subr.bf16.mxu0 0
        %661 = vmatpush1.bf16.msra.mxu0 0
        %662 = vmatprep.subr.bf16.mxu0 0
        %663 = vmatpush1.bf16.msra.mxu0 0
        %664 = vmatprep.subr.bf16.mxu0 0
        %665 = vmatpush1.bf16.msra.mxu0 0
        %666 = vmatprep.subr.bf16.mxu0 0
        %667 = vmatpush1.bf16.msra.mxu0 0
        %668 = vmatprep.subr.bf16.mxu0 0
        %669 = vmatpush1.bf16.msra.mxu0 0
        %670 = vmatprep.subr.bf16.mxu0 0
        %671 = vmatpush1.bf16.msra.mxu0 0
        %672 = vmatprep.mubr.bf16.mxu0 0
        %673 = vmatmul.mubr.bf16.gmra.mrb[0].mxu0 %v634
        %v674 = vpop.f32.mrb[0].mxu0
        %v675 = vadd.f32 0.0, %v674
        %v676 = vpop.f32.mrb[0].mxu0
        %v677 = vpop.f32.mrb[0].mxu0
        %v678 = vadd.f32 0.0, %v677
        %v679 = vpop.f32.mrb[0].mxu0
        %680 = vdwg.mxu0
        %v683 = vunpack.c.l.b16 %v586
        %v684 = vunpack.c.h.b16 %v586
        %v685 = vunpack.c.l.b16 %v587
        %v686 = vunpack.c.h.b16 %v587
        %v687 = vpack.c.b16 %v685, %v683
        %v688 = vpack.c.b16 %v686, %v684
        %v723 = vunpack.c.l.b16 %v588
        %v724 = vunpack.c.l.b16 %v589
        %v725 = vunpack.c.l.b16 %v590
        %v726 = vunpack.c.l.b16 %v591
        %v727 = vunpack.c.l.b16 %v592
        %v728 = vunpack.c.l.b16 %v593
        %v729 = vunpack.c.l.b16 %v594
        %v730 = vunpack.c.l.b16 %v595
        %v731 = vunpack.c.l.b16 %v596
        %v732 = vunpack.c.l.b16 %v597
        %v733 = vunpack.c.l.b16 %v598
        %v734 = vunpack.c.l.b16 %v599
        %v735 = vunpack.c.l.b16 %v600
        %v736 = vunpack.c.l.b16 %v601
        %v737 = vunpack.c.l.b16 %v602
        %v738 = vunpack.c.l.b16 %v603
        %v739 = vunpack.c.l.b16 %v604
        %v740 = vunpack.c.l.b16 %v605
        %v741 = vunpack.c.l.b16 %v606
        %v742 = vunpack.c.l.b16 %v607
        %v743 = vunpack.c.l.b16 %v608
        %v744 = vunpack.c.l.b16 %v609
        %v745 = vunpack.c.l.b16 %v610
        %v746 = vunpack.c.l.b16 %v611
        %v747 = vunpack.c.l.b16 %v612
        %v748 = vunpack.c.l.b16 %v613
        %v749 = vunpack.c.l.b16 %v614
        %v750 = vunpack.c.l.b16 %v615
        %v751 = vunpack.c.l.b16 %v616
        %v752 = vunpack.c.l.b16 %v617
        %v753 = vunpack.c.l.b16 %v618
        %v754 = vunpack.c.l.b16 %v619
        %v755 = vpack.c.b16 %v724, %v723
        %v756 = vpack.c.b16 %v726, %v725
        %v757 = vpack.c.b16 %v728, %v727
        %v758 = vpack.c.b16 %v730, %v729
        %v759 = vpack.c.b16 %v732, %v731
        %v760 = vpack.c.b16 %v734, %v733
        %v761 = vpack.c.b16 %v736, %v735
        %v762 = vpack.c.b16 %v738, %v737
        %v763 = vpack.c.b16 %v740, %v739
        %v764 = vpack.c.b16 %v742, %v741
        %v765 = vpack.c.b16 %v744, %v743
        %v766 = vpack.c.b16 %v746, %v745
        %v767 = vpack.c.b16 %v748, %v747
        %v768 = vpack.c.b16 %v750, %v749
        %v769 = vpack.c.b16 %v752, %v751
        %v770 = vpack.c.b16 %v754, %v753
        %787 = vmatprep.subr.bf16.mxu0 0
        %788 = vmatpush1.bf16.msra.mxu0 %v755
        %789 = vmatprep.subr.bf16.mxu0 0
        %790 = vmatpush1.bf16.msra.mxu0 %v756
        %791 = vmatprep.subr.bf16.mxu0 0
        %792 = vmatpush1.bf16.msra.mxu0 %v757
        %793 = vmatprep.subr.bf16.mxu0 0
        %794 = vmatpush1.bf16.msra.mxu0 %v758
        %795 = vmatprep.subr.bf16.mxu0 0
        %796 = vmatpush1.bf16.msra.mxu0 %v759
        %797 = vmatprep.subr.bf16.mxu0 0
        %798 = vmatpush1.bf16.msra.mxu0 %v760
        %799 = vmatprep.subr.bf16.mxu0 0
        %800 = vmatpush1.bf16.msra.mxu0 %v761
        %801 = vmatprep.subr.bf16.mxu0 0
        %802 = vmatpush1.bf16.msra.mxu0 %v762
        %803 = vmatprep.subr.bf16.mxu0 0
        %804 = vmatpush1.bf16.msra.mxu0 %v763
        %805 = vmatprep.subr.bf16.mxu0 0
        %806 = vmatpush1.bf16.msra.mxu0 %v764
        %807 = vmatprep.subr.bf16.mxu0 0
        %808 = vmatpush1.bf16.msra.mxu0 %v765
        %809 = vmatprep.subr.bf16.mxu0 0
        %810 = vmatpush1.bf16.msra.mxu0 %v766
        %811 = vmatprep.subr.bf16.mxu0 0
        %812 = vmatpush1.bf16.msra.mxu0 %v767
        %813 = vmatprep.subr.bf16.mxu0 0
        %814 = vmatpush1.bf16.msra.mxu0 %v768
        %815 = vmatprep.subr.bf16.mxu0 0
        %816 = vmatpush1.bf16.msra.mxu0 %v769
        %817 = vmatprep.subr.bf16.mxu0 0
        %818 = vmatpush1.bf16.msra.mxu0 %v770
        %819 = vmatprep.mubr.bf16.mxu0 %v688
        %820 = vmatmul.mubr.bf16.gmra.mrb[0].mxu0 %v687
        %v821 = vpop.f32.mrb[0].mxu0
        %v822 = vadd.f32 %v675, %v821
        %v823 = vpop.f32.mrb[0].mxu0
        %v824 = vpop.f32.mrb[0].mxu0
        %v825 = vadd.f32 %v678, %v824
        %v826 = vpop.f32.mrb[0].mxu0
        %827 = vdwg.mxu0
        %v828 = vld [vmem:[#allocation5] sm:$0x1]
        %v830 = vlaneseq
        %v831 = vshrl.u32 %v830, 7
        %v832 = vsub.s32 0, %v831
        %v833 = vrot.slane %v828, %v832
        %v835 = vadd.f32 %v822, %v833
        %v836 = vadd.f32 %v825, %v833
        %v837 = vmax.f32 %v835, 0.0
        %v838 = vmax.f32 %v836, 0.0
        %v839 = vpack.c.bf16 %v838, %v837
        %v840 = vld [vmem:[%s6] sm:$0xf]
        %v841 = vld [vmem:[%s6 + $0x4] sm:$0xf]
        %v842 = vld [vmem:[%s6 + $0x8] sm:$0xf]
        %v843 = vld [vmem:[%s6 + $0xc] sm:$0xf]
        %v844 = vld [vmem:[%s6 + $0x10] sm:$0xf]
        %v845 = vld [vmem:[%s6 + $0x14] sm:$0xf]
        %v846 = vld [vmem:[%s6 + $0x18] sm:$0xf]
        %v847 = vld [vmem:[%s6 + $0x1c] sm:$0xf]
        %v848 = vld [vmem:[%s6 + $0x20] sm:$0xf]
        %v849 = vld [vmem:[%s6 + $0x24] sm:$0xf]
        %v850 = vld [vmem:[%s6 + $0x28] sm:$0xf]
        %v851 = vld [vmem:[%s6 + $0x2c] sm:$0xf]
        %v852 = vld [vmem:[%s6 + $0x30] sm:$0xf]
        %v853 = vld [vmem:[%s6 + $0x34] sm:$0xf]
        %v854 = vld [vmem:[%s6 + $0x38] sm:$0xf]
        %v855 = vld [vmem:[%s6 + $0x3c] sm:$0xf]
        %v856 = vld [vmem:[#allocation7] sm:$0x1]
        %v858 = vlaneseq
        %v859 = vshrl.u32 %v858, 7
        %v860 = vsub.s32 0, %v859
        %v861 = vrot.slane %v856, %v860
        %v879 = vunpack.c.l.b16 %v840
        %v880 = vunpack.c.l.b16 %v841
        %v881 = vunpack.c.l.b16 %v842
        %v882 = vunpack.c.l.b16 %v843
        %v883 = vunpack.c.l.b16 %v844
        %v884 = vunpack.c.l.b16 %v845
        %v885 = vunpack.c.l.b16 %v846
        %v886 = vunpack.c.l.b16 %v847
        %v887 = vunpack.c.l.b16 %v848
        %v888 = vunpack.c.l.b16 %v849
        %v889 = vunpack.c.l.b16 %v850
        %v890 = vunpack.c.l.b16 %v851
        %v891 = vunpack.c.l.b16 %v852
        %v892 = vunpack.c.l.b16 %v853
        %v893 = vunpack.c.l.b16 %v854
        %v894 = vunpack.c.l.b16 %v855
        %v895 = vpack.c.b16 %v880, %v879
        %v896 = vpack.c.b16 %v882, %v881
        %v897 = vpack.c.b16 %v884, %v883
        %v898 = vpack.c.b16 %v886, %v885
        %v899 = vpack.c.b16 %v888, %v887
        %v900 = vpack.c.b16 %v890, %v889
        %v901 = vpack.c.b16 %v892, %v891
        %v902 = vpack.c.b16 %v894, %v893
        %911 = vmatprep.subr.bf16.mxu0 0
        %912 = vmatpush1.bf16.msra.mxu0 %v895
        %913 = vmatprep.subr.bf16.mxu0 0
        %914 = vmatpush1.bf16.msra.mxu0 %v896
        %915 = vmatprep.subr.bf16.mxu0 0
        %916 = vmatpush1.bf16.msra.mxu0 %v897
        %917 = vmatprep.subr.bf16.mxu0 0
        %918 = vmatpush1.bf16.msra.mxu0 %v898
        %919 = vmatprep.subr.bf16.mxu0 0
        %920 = vmatpush1.bf16.msra.mxu0 %v899
        %921 = vmatprep.subr.bf16.mxu0 0
        %922 = vmatpush1.bf16.msra.mxu0 %v900
        %923 = vmatprep.subr.bf16.mxu0 0
        %924 = vmatpush1.bf16.msra.mxu0 %v901
        %925 = vmatprep.subr.bf16.mxu0 0
        %926 = vmatpush1.bf16.msra.mxu0 %v902
        %927 = vmatprep.subr.bf16.mxu0 0
        %928 = vmatpush1.bf16.msra.mxu0 0
        %929 = vmatprep.subr.bf16.mxu0 0
        %930 = vmatpush1.bf16.msra.mxu0 0
        %931 = vmatprep.subr.bf16.mxu0 0
        %932 = vmatpush1.bf16.msra.mxu0 0
        %933 = vmatprep.subr.bf16.mxu0 0
        %934 = vmatpush1.bf16.msra.mxu0 0
        %935 = vmatprep.subr.bf16.mxu0 0
        %936 = vmatpush1.bf16.msra.mxu0 0
        %937 = vmatprep.subr.bf16.mxu0 0
        %938 = vmatpush1.bf16.msra.mxu0 0
        %939 = vmatprep.subr.bf16.mxu0 0
        %940 = vmatpush1.bf16.msra.mxu0 0
        %941 = vmatprep.subr.bf16.mxu0 0
        %942 = vmatpush1.bf16.msra.mxu0 0
        %943 = vmatprep.mubr.bf16.mxu0 0
        %944 = vmatmul.mubr.bf16.gmra.mrb[0].mxu0 %v839
        %v945 = vpop.f32.mrb[0].mxu0
        %v946 = vadd.f32 %v861, %v945
        %v947 = vpop.f32.mrb[0].mxu0
        %v948 = vpop.f32.mrb[0].mxu0
        %v949 = vadd.f32 %v861, %v948
        %v950 = vpop.f32.mrb[0].mxu0
        %951 = vdwg.mxu0
        %v952 = vmul.f32 %v946, 0.5
        %v953 = vmul.f32 %v949, 0.5
        %v954 = vmul.f32 %v952, 1.442695
        %v955 = vpow.pop %v954
        %v956 = vmul.f32 %v953, 1.442695
        %v957 = vpow.pop %v956
        %v958 = vld [vmem:[%s579] sm:$0xff]
        %v959 = vld [vmem:[%s579 + $0x8] sm:$0xff]
        %962 = vrot.lane.b32.xlu0 %v955, 112
        %v963 = vpop.permute.xlu0 %962
        %964 = vrot.lane.b32.xlu0 %v957, 112
        %v965 = vpop.permute.xlu0 %964
        %v968 = vmul.f32 %v958, %v963
        %v969 = vmul.f32 %v959, %v965
        %v970 = vadd.f32 %v946, %v968
        %v971 = vadd.f32 %v949, %v969
        %v972 = vpack.c.bf16 %v971, %v970
        %v973 = vld [vmem:[%s8] sm:$0xf]
        %v974 = vld [vmem:[%s8 + $0x4] sm:$0xf]
        %v975 = vld [vmem:[%s9] sm:$0xf]
        %v976 = vld [vmem:[%s9 + $0x4] sm:$0x1]
        %v979 = vunpack.c.l.b16 %v975
        %v980 = vunpack.c.l.b16 %v976
        %v981 = vpack.c.b16 %v980, %v979
        %v983 = vsel %vm636, %v981, 0
        %985 = vmatprep.subr.bf16.mxu0 0
        %986 = vmatpush1.bf16.msra.mxu0 %v983
        %987 = vmatprep.subr.bf16.mxu0 0
        %988 = vmatpush1.bf16.msra.mxu0 0
        %989 = vmatprep.subr.bf16.mxu0 0
        %990 = vmatpush1.bf16.msra.mxu0 0
        %991 = vmatprep.subr.bf16.mxu0 0
        %992 = vmatpush1.bf16.msra.mxu0 0
        %993 = vmatprep.subr.bf16.mxu0 0
        %994 = vmatpush1.bf16.msra.mxu0 0
        %995 = vmatprep.subr.bf16.mxu0 0
        %996 = vmatpush1.bf16.msra.mxu0 0
        %997 = vmatprep.subr.bf16.mxu0 0
        %998 = vmatpush1.bf16.msra.mxu0 0
        %999 = vmatprep.subr.bf16.mxu0 0
        %1000 = vmatpush1.bf16.msra.mxu0 0
        %1001 = vmatprep.subr.bf16.mxu0 0
        %1002 = vmatpush1.bf16.msra.mxu0 0
        %1003 = vmatprep.subr.bf16.mxu0 0
        %1004 = vmatpush1.bf16.msra.mxu0 0
        %1005 = vmatprep.subr.bf16.mxu0 0
        %1006 = vmatpush1.bf16.msra.mxu0 0
        %1007 = vmatprep.subr.bf16.mxu0 0
        %1008 = vmatpush1.bf16.msra.mxu0 0
        %1009 = vmatprep.subr.bf16.mxu0 0
        %1010 = vmatpush1.bf16.msra.mxu0 0
        %1011 = vmatprep.subr.bf16.mxu0 0
        %1012 = vmatpush1.bf16.msra.mxu0 0
        %1013 = vmatprep.subr.bf16.mxu0 0
        %1014 = vmatpush1.bf16.msra.mxu0 0
        %1015 = vmatprep.subr.bf16.mxu0 0
        %1016 = vmatpush1.bf16.msra.mxu0 0
        %1017 = vmatprep.mubr.bf16.mxu0 0
        %1018 = vmatmul.mubr.bf16.gmra.mrb[0].mxu0 %v634
        %v1019 = vpop.f32.mrb[0].mxu0
        %v1020 = vadd.f32 0.0, %v1019
        %v1021 = vpop.f32.mrb[0].mxu0
        %v1022 = vpop.f32.mrb[0].mxu0
        %v1023 = vadd.f32 0.0, %v1022
        %v1024 = vpop.f32.mrb[0].mxu0
        %1025 = vdwg.mxu0
        %v1028 = vunpack.c.l.b16 %v973
        %v1029 = vunpack.c.l.b16 %v974
        %v1030 = vpack.c.b16 %v1029, %v1028
        %vm1032 = vcmask 130048
        %v1034 = vsel %vm1032, %v972, 0
        %1036 = vmatprep.subr.bf16.mxu0 0
        %1037 = vmatpush1.bf16.msra.mxu0 %v1030
        %1038 = vmatprep.subr.bf16.mxu0 0
        %1039 = vmatpush1.bf16.msra.mxu0 0
        %1040 = vmatprep.subr.bf16.mxu0 0
        %1041 = vmatpush1.bf16.msra.mxu0 0
        %1042 = vmatprep.subr.bf16.mxu0 0
        %1043 = vmatpush1.bf16.msra.mxu0 0
        %1044 = vmatprep.subr.bf16.mxu0 0
        %1045 = vmatpush1.bf16.msra.mxu0 0
        %1046 = vmatprep.subr.bf16.mxu0 0
        %1047 = vmatpush1.bf16.msra.mxu0 0
        %1048 = vmatprep.subr.bf16.mxu0 0
        %1049 = vmatpush1.bf16.msra.mxu0 0
        %1050 = vmatprep.subr.bf16.mxu0 0
        %1051 = vmatpush1.bf16.msra.mxu0 0
        %1052 = vmatprep.subr.bf16.mxu0 0
        %1053 = vmatpush1.bf16.msra.mxu0 0
        %1054 = vmatprep.subr.bf16.mxu0 0
        %1055 = vmatpush1.bf16.msra.mxu0 0
        %1056 = vmatprep.subr.bf16.mxu0 0
        %1057 = vmatpush1.bf16.msra.mxu0 0
        %1058 = vmatprep.subr.bf16.mxu0 0
        %1059 = vmatpush1.bf16.msra.mxu0 0
        %1060 = vmatprep.subr.bf16.mxu0 0
        %1061 = vmatpush1.bf16.msra.mxu0 0
        %1062 = vmatprep.subr.bf16.mxu0 0
        %1063 = vmatpush1.bf16.msra.mxu0 0
        %1064 = vmatprep.subr.bf16.mxu0 0
        %1065 = vmatpush1.bf16.msra.mxu0 0
        %1066 = vmatprep.subr.bf16.mxu0 0
        %1067 = vmatpush1.bf16.msra.mxu0 0
        %1068 = vmatprep.mubr.bf16.mxu0 0
        %1069 = vmatmul.mubr.bf16.gmra.mrb[0].mxu0 %v1034
        %v1070 = vpop.f32.mrb[0].mxu0
        %v1071 = vadd.f32 %v1020, %v1070
        %v1072 = vpop.f32.mrb[0].mxu0
        %v1073 = vpop.f32.mrb[0].mxu0
        %v1074 = vadd.f32 %v1023, %v1073
        %v1075 = vpop.f32.mrb[0].mxu0
        %1076 = vdwg.mxu0
        %v1077 = vld [vmem:[%s10] sm:$0x1]
        %v1079 = vlaneseq
        %v1080 = vshrl.u32 %v1079, 7
        %v1081 = vsub.s32 0, %v1080
        %v1082 = vrot.slane %v1077, %v1081
        %v1084 = vadd.f32 %v1071, %v1082
        %v1085 = vadd.f32 %v1074, %v1082
        %v1086 = vmax.f32 %v1084, 0.0
        %v1087 = vmax.f32 %v1085, 0.0
        %v1088 = vpack.c.bf16 %v1087, %v1086
        %v1089 = vld [vmem:[#allocation8] sm:$0xff]
        %v1090 = vld [vmem:[#allocation8 + $0x8] sm:$0xff]
        %v1091 = vld [vmem:[#allocation8 + $0x10] sm:$0xff]
        %v1092 = vld [vmem:[#allocation8 + $0x18] sm:$0xff]
        %v1093 = vld [vmem:[#allocation8 + $0x20] sm:$0xff]
        %v1094 = vld [vmem:[#allocation8 + $0x28] sm:$0xff]
        %v1095 = vld [vmem:[#allocation8 + $0x30] sm:$0xff]
        %v1096 = vld [vmem:[#allocation8 + $0x38] sm:$0xff]
        %v1097 = vld [vmem:[#allocation8 + $0x40] sm:$0xff]
        %v1098 = vld [vmem:[#allocation8 + $0x48] sm:$0xff]
        %v1099 = vld [vmem:[#allocation8 + $0x50] sm:$0xff]
        %v1100 = vld [vmem:[#allocation8 + $0x58] sm:$0xff]
        %v1101 = vld [vmem:[#allocation8 + $0x60] sm:$0xff]
        %v1102 = vld [vmem:[#allocation8 + $0x68] sm:$0xff]
        %v1103 = vld [vmem:[#allocation8 + $0x70] sm:$0xff]
        %v1104 = vld [vmem:[#allocation8 + $0x78] sm:$0xff]
        %v1105 = vld [vmem:[%s12] sm:$0x3]
        %v1107 = vlaneseq
        %v1108 = vshrl.u32 %v1107, 7
        %v1109 = vsub.s32 0, %v1108
        %v1110 = vrot.slane %v1105, %v1109
        %v1111 = vlaneseq
        %v1112 = vshrl.u32 %v1111, 7
        %v1113 = vsub.s32 1, %v1112
        %v1114 = vrot.slane %v1105, %v1113
        %v1133 = vunpack.c.l.b16 %v1089
        %v1134 = vunpack.c.h.b16 %v1089
        %v1135 = vunpack.c.l.b16 %v1090
        %v1136 = vunpack.c.h.b16 %v1090
        %v1137 = vunpack.c.l.b16 %v1091
        %v1138 = vunpack.c.h.b16 %v1091
        %v1139 = vunpack.c.l.b16 %v1092
        %v1140 = vunpack.c.h.b16 %v1092
        %v1141 = vunpack.c.l.b16 %v1093
        %v1142 = vunpack.c.h.b16 %v1093
        %v1143 = vunpack.c.l.b16 %v1094
        %v1144 = vunpack.c.h.b16 %v1094
        %v1145 = vunpack.c.l.b16 %v1095
        %v1146 = vunpack.c.h.b16 %v1095
        %v1147 = vunpack.c.l.b16 %v1096
        %v1148 = vunpack.c.h.b16 %v1096
        %v1149 = vunpack.c.l.b16 %v1097
        %v1150 = vunpack.c.h.b16 %v1097
        %v1151 = vunpack.c.l.b16 %v1098
        %v1152 = vunpack.c.h.b16 %v1098
        %v1153 = vunpack.c.l.b16 %v1099
        %v1154 = vunpack.c.h.b16 %v1099
        %v1155 = vunpack.c.l.b16 %v1100
        %v1156 = vunpack.c.h.b16 %v1100
        %v1157 = vunpack.c.l.b16 %v1101
        %v1158 = vunpack.c.h.b16 %v1101
        %v1159 = vunpack.c.l.b16 %v1102
        %v1160 = vunpack.c.h.b16 %v1102
        %v1161 = vunpack.c.l.b16 %v1103
        %v1162 = vunpack.c.h.b16 %v1103
        %v1163 = vunpack.c.l.b16 %v1104
        %v1164 = vunpack.c.h.b16 %v1104
        %v1165 = vpack.c.b16 %v1135, %v1133
        %v1166 = vpack.c.b16 %v1136, %v1134
        %v1167 = vpack.c.b16 %v1139, %v1137
        %v1168 = vpack.c.b16 %v1140, %v1138
        %v1169 = vpack.c.b16 %v1143, %v1141
        %v1170 = vpack.c.b16 %v1144, %v1142
        %v1171 = vpack.c.b16 %v1147, %v1145
        %v1172 = vpack.c.b16 %v1148, %v1146
        %v1173 = vpack.c.b16 %v1151, %v1149
        %v1174 = vpack.c.b16 %v1152, %v1150
        %v1175 = vpack.c.b16 %v1155, %v1153
        %v1176 = vpack.c.b16 %v1156, %v1154
        %v1177 = vpack.c.b16 %v1159, %v1157
        %v1178 = vpack.c.b16 %v1160, %v1158
        %v1179 = vpack.c.b16 %v1163, %v1161
        %v1180 = vpack.c.b16 %v1164, %v1162
        %1197 = vmatprep.subr.bf16.mxu0 %v1166
        %1198 = vmatpush1.bf16.msra.mxu0 %v1165
        %1199 = vmatprep.subr.bf16.mxu0 %v1168
        %1200 = vmatpush1.bf16.msra.mxu0 %v1167
        %1201 = vmatprep.subr.bf16.mxu0 %v1170
        %1202 = vmatpush1.bf16.msra.mxu0 %v1169
        %1203 = vmatprep.subr.bf16.mxu0 %v1172
        %1204 = vmatpush1.bf16.msra.mxu0 %v1171
        %1205 = vmatprep.subr.bf16.mxu0 %v1174
        %1206 = vmatpush1.bf16.msra.mxu0 %v1173
        %1207 = vmatprep.subr.bf16.mxu0 %v1176
        %1208 = vmatpush1.bf16.msra.mxu0 %v1175
        %1209 = vmatprep.subr.bf16.mxu0 %v1178
        %1210 = vmatpush1.bf16.msra.mxu0 %v1177
        %1211 = vmatprep.subr.bf16.mxu0 %v1180
        %1212 = vmatpush1.bf16.msra.mxu0 %v1179
        %1213 = vmatprep.subr.bf16.mxu0 0
        %1214 = vmatpush1.bf16.msra.mxu0 0
        %1215 = vmatprep.subr.bf16.mxu0 0
        %1216 = vmatpush1.bf16.msra.mxu0 0
        %1217 = vmatprep.subr.bf16.mxu0 0
        %1218 = vmatpush1.bf16.msra.mxu0 0
        %1219 = vmatprep.subr.bf16.mxu0 0
        %1220 = vmatpush1.bf16.msra.mxu0 0
        %1221 = vmatprep.subr.bf16.mxu0 0
        %1222 = vmatpush1.bf16.msra.mxu0 0
        %1223 = vmatprep.subr.bf16.mxu0 0
        %1224 = vmatpush1.bf16.msra.mxu0 0
        %1225 = vmatprep.subr.bf16.mxu0 0
        %1226 = vmatpush1.bf16.msra.mxu0 0
        %1227 = vmatprep.subr.bf16.mxu0 0
        %1228 = vmatpush1.bf16.msra.mxu0 0
        %1229 = vmatprep.mubr.bf16.mxu0 0
        %1230 = vmatmul.mubr.bf16.gmra.mrb[0].mxu0 %v1088
        %v1231 = vpop.f32.mrb[0].mxu0
        %v1232 = vadd.f32 %v1110, %v1231
        %v1233 = vpop.f32.mrb[0].mxu0
        %v1234 = vadd.f32 %v1114, %v1233
        %v1235 = vpop.f32.mrb[0].mxu0
        %v1236 = vadd.f32 %v1110, %v1235
        %v1237 = vpop.f32.mrb[0].mxu0
        %v1238 = vadd.f32 %v1114, %v1237
        %1239 = vdwg.mxu0
        %v1240 = vxor.u32 %v1232, 2147483648
        %v1241 = vxor.u32 %v1234, 2147483648
        %v1242 = vxor.u32 %v1236, 2147483648
        %v1243 = vxor.u32 %v1238, 2147483648
        %v1244 = vmul.f32 %v1240, 1.442695
        %v1245 = vpow.pop %v1244
        %v1246 = vmul.f32 %v1241, 1.442695
        %v1247 = vpow.pop %v1246
        %v1248 = vmul.f32 %v1242, 1.442695
        %v1249 = vpow.pop %v1248
        %v1250 = vmul.f32 %v1243, 1.442695
        %v1251 = vpow.pop %v1250
        %v1252 = vadd.f32 %v1245, 1.0
        %v1253 = vadd.f32 %v1247, 1.0
        %v1254 = vadd.f32 %v1249, 1.0
        %v1255 = vadd.f32 %v1251, 1.0
        %v1256 = vrcp.pop %v1252
        %v1257 = vmul.f32 1.0, %v1256
        %v1258 = vrcp.pop %v1253
        %v1259 = vmul.f32 1.0, %v1258
        %v1260 = vrcp.pop %v1254
        %v1261 = vmul.f32 1.0, %v1260
        %v1262 = vrcp.pop %v1255
        %v1263 = vmul.f32 1.0, %v1262
        %v1264 = vpack.c.bf16 %v1261, %v1257
        %v1265 = vpack.c.bf16 %v1263, %v1259
        %v1268 = vunpack.c.l.b16 %v1264
        %v1269 = vunpack.c.l.b16 %v1265
        %v1270 = vunpack.c.h.b16 %v1264
        %v1271 = vunpack.c.h.b16 %v1265
        %v1272 = vpack.c.b16 %v1269, %v1268
        %v1273 = vpack.c.b16 %v1271, %v1270
        %1276 = vst [vmem:[%s554] sm:$0xff] %v1272
        %1277 = vst [vmem:[%s554 + $0x8] sm:$0xff] %v1273
        %1280 = vrot.lane.b32.xlu0 %v970, 32
        %v1281 = vpop.permute.xlu0 %1280
        %1282 = vrot.lane.b32.xlu0 %v971, 32
        %v1283 = vpop.permute.xlu0 %1282
        %vm1286 = vcmask 261120
        %v1287 = vsel %vm1286, %v946, %v1281
        %v1288 = vsel %vm1286, %v949, %v1283
        %vm1289 = vcmask 392192
        %v1290 = vsel %vm1289, %v1287, 0.0
        %v1291 = vsel %vm1289, %v1288, 0.0
        %v1292 = vpack.c.bf16 %v1291, %v1290
        %v1294 = vunpack.c.l.b16 %v1292
        %v1295 = vunpack.c.h.b16 %v1292
        %v1296 = vpack.c.b16 %v1294, %v1294
        %v1297 = vpack.c.b16 %v1295, %v1295
        %1300 = vst [vmem:[%s561] sm:$0xf] %v1296
        %1301 = vst [vmem:[%s561 + $0x4] sm:$0xf] %v1297
        %s1302 = sand.u32 %s331, 1
        %s1303 = scalar_lea.sflag [#allocation4], %s1302
        %s1304 = sand.u32 %s331, 1
        %s1305 = smul.addr %s1304, 16
        %s1306 = scalar_lea.vmem [#allocation10], %s1305
        %s1307 = sand.u32 %s357, 1
        %s1308 = scalar_lea.sflag [#allocation12], %s1307
        %s1309 = sand.u32 %s357, 1
        %s1310 = smul.addr %s1309, 8
        %s1311 = scalar_lea.vmem [#allocation11], %s1310
        // Predicated region
        $region89: #{tpu_custom_call.1} parent=71 // pred_check
          %p1312 = pneg %p341
        $region90: #{tpu_custom_call.1} parent=71 // pred_check_branch
          %1314 = sbr.rel (%p1312) target = $region92
        $region91: #{tpu_custom_call.1} parent=71 // pred_region
          %s1315 = smul.u32 2, %s35
          %s1317 = ssub.s32 256, 256
          %1318 = vsyncadd %s1303, %s1317
          %s1319 = smul.addr %s1315, 2
          %s1320 = smul.addr %s1319, 64
          %s1321 = scalar_lea.hbm %s13, %s1320
          %s1322 = sshll.u32 %s1306, 4
          %s1323 = int_to_ptr.vmem [resolvable:$true] %s1322
          %1328 = dma.vmem_to_hbm [thread:$0]  %s1323, 256, %s1321, %s1303, 128, 128, 8
        $region92: #{tpu_custom_call.1} parent=71 // pred_fallthru
          _
        // Predicated region
        $region93: #{tpu_custom_call.1} parent=71 // pred_check
          %p1329 = pneg %p367
        $region94: #{tpu_custom_call.1} parent=71 // pred_check_branch
          %1331 = sbr.rel (%p1329) target = $region96
        $region95: #{tpu_custom_call.1} parent=71 // pred_region
          %s1332 = smul.u32 2, %s35
          %s1334 = ssub.s32 128, 128
          %1335 = vsyncadd %s1308, %s1334
          %s1336 = smul.addr %s1332, 64
          %s1337 = scalar_lea.hbm %s14, %s1336
          %s1338 = sshll.u32 %s1311, 4
          %s1339 = int_to_ptr.vmem [resolvable:$true] %s1338
          %1344 = dma.vmem_to_hbm [thread:$0]  %s1339, 128, %s1337, %s1308, 64, 64, 4
        $region96: #{tpu_custom_call.1} parent=71 // pred_fallthru
          _
      $region72: #{tpu_custom_call.1} parent=5 // pred_fallthru
        _
      %p1345 = scmp.le.s32.totalorder 2, %s30
      // Predicated region
      $region97: #{tpu_custom_call.1} parent=5 // pred_check
        %p1346 = pneg %p1345
      $region98: #{tpu_custom_call.1} parent=5 // pred_check_branch
        %1348 = sbr.rel (%p1346) target = $region100
      $region99: #{tpu_custom_call.1} parent=5 // pred_region
        %s1349 = ssub.s32 %s30, 2
        // Predicated region
        $region101: #{tpu_custom_call.1} parent=99 // pred_check
          %p1350 = pneg %p347
        $region102: #{tpu_custom_call.1} parent=99 // pred_check_branch
          %1352 = sbr.rel (%p1350) target = $region104
        $region103: #{tpu_custom_call.1} parent=99 // pred_region
          %s1353 = sand.u32 %s332, 1
          %s1354 = scalar_lea.sflag [#allocation4], %s1353
          %s1355 = sand.u32 %s332, 1
          %s1356 = smul.addr %s1355, 16
          %s1357 = scalar_lea.vmem [#allocation10], %s1356
          %1358 = dma.done %s1354, 256
        $region104: #{tpu_custom_call.1} parent=99 // pred_fallthru
          _
        // Predicated region
        $region105: #{tpu_custom_call.1} parent=99 // pred_check
          %p1359 = pneg %p373
        $region106: #{tpu_custom_call.1} parent=99 // pred_check_branch
          %1361 = sbr.rel (%p1359) target = $region108
        $region107: #{tpu_custom_call.1} parent=99 // pred_region
          %s1362 = sand.u32 %s358, 1
          %s1363 = scalar_lea.sflag [#allocation12], %s1362
          %s1364 = sand.u32 %s358, 1
          %s1365 = smul.addr %s1364, 8
          %s1366 = scalar_lea.vmem [#allocation11], %s1365
          %1367 = dma.done %s1363, 128
        $region108: #{tpu_custom_call.1} parent=99 // pred_fallthru
          _
      $region100: #{tpu_custom_call.1} parent=5 // pred_fallthru
        _
    $region6: #{tpu_custom_call.1} parent=1 // loop_footer
      %s34 = sadd.s32 1, %s30
    $region7: #{tpu_custom_call.1} parent=1 // loop_footer_branch
      %29 = sbr.rel target = $region3
    $region8: #{tpu_custom_call.1} parent=1 // loop_exit
      _
    %1368 = vsyncpa [#allocation3], 1
    %s1369 = scalar_lea.sflag [#allocation3], 1
    %1370 = vsyncpa %s1369, 1
    %1371 = vsyncpa [#allocation6], 1
    %1372 = vsyncpa [#allocation9], 1
    %1373 = vsyncpa [#allocation4], 1
    %s1374 = scalar_lea.sflag [#allocation4], 1
    %1375 = vsyncpa %s1374, 1
    %1376 = vsyncpa [#allocation12], 1
    %s1377 = scalar_lea.sflag [#allocation12], 1
    %1378 = vsyncpa %s1377, 1

// kernel: tpu_custom_call.1
$region0: #{tpu_custom_call.1}
  #allocation0 [shape = 'u32[]', space=smem, size = 0x4, offset = 0x4, fixed_abs, tag = 'smem constant byte address 0x4 - core index']
  #allocation1 [shape = 'u32[144,128]{1,0:T(1,128)}', space=vmem, size = 0x12000, scoped, tag = 'internal scratch']
  %s0 = inlined_call_operand.vmem [shape: bf16[32,256], index: 0, kind: input, shape index: {}]
  %s1 = inlined_call_operand.vmem [shape: bf16[32,10], index: 1, kind: input, shape index: {}]
  %s2 = inlined_call_operand.vmem [shape: f32[32,16], index: 2, kind: input, shape index: {}]
  %s3 = inlined_call_operand.vmem [shape: bf16[256,128], index: 3, kind: input, shape index: {}]
  %s4 = inlined_call_operand.hbm [shape: bf16[10,128], index: 4, kind: input, shape index: {}]
  %s5 = inlined_call_operand.hbm [shape: f32[1,128], index: 5, kind: input, shape index: {}]
  %s6 = inlined_call_operand.vmem [shape: bf16[128,32], index: 6, kind: input, shape index: {}]
  %s7 = inlined_call_operand.hbm [shape: f32[1,32], index: 7, kind: input, shape index: {}]
  %s8 = inlined_call_operand.vmem [shape: bf16[16,128], index: 8, kind: input, shape index: {}]
  %s9 = inlined_call_operand.vmem [shape: bf16[10,128], index: 9, kind: input, shape index: {}]
  %s10 = inlined_call_operand.vmem [shape: f32[1,128], index: 10, kind: input, shape index: {}]
  %s11 = inlined_call_operand.hbm [shape: bf16[128,256], index: 11, kind: input, shape index: {}]
  %s12 = inlined_call_operand.vmem [shape: f32[1,256], index: 12, kind: input, shape index: {}]
  %s13 = inlined_call_operand.hbm [shape: bf16[32,256], index: 13, kind: output, shape index: {0}]
  %s14 = inlined_call_operand.hbm [shape: bf16[32,128], index: 14, kind: output, shape index: {1}]
  %15 = xla_tuple %s13, %s14
  %s16 = sld [smem:[#allocation0]]
  $region109: #{tpu_custom_call.1} parent=0
    _
  %s18 = ssub.s32 1, %s16
  %s19 = scalar_select 0, %s18, %s16
  $region1: #{tpu_custom_call.1} parent=0
    #allocation2 [shape = 'u8[4096]{0}', space=vmem, size = 0x1000, scoped, tag = 'input window, operand 4, single buffered']
    #allocation3 [shape = 's32[2]{0}', space=sflag, size = 0x8, scoped, tag = 'scoped memory for tpu_custom_call.1']
    #allocation4 [shape = 's32[2]{0}', space=sflag, size = 0x8, scoped, tag = 'scoped memory for tpu_custom_call.1']
    #allocation5 [shape = 'u8[512]{0}', space=vmem, size = 0x400, scoped, tag = 'input window, operand 5, single buffered']
    #allocation6 [shape = 's32[1]{0}', space=sflag, size = 0x4, scoped, tag = 'scoped memory for tpu_custom_call.1']
    #allocation7 [shape = 'u8[512]{0}', space=vmem, size = 0x400, scoped, tag = 'input window, operand 7, single buffered']
    #allocation8 [shape = 'u8[65536]{0}', space=vmem, size = 0x10000, scoped, tag = 'input window, operand 11, single buffered']
    #allocation9 [shape = 's32[1]{0}', space=sflag, size = 0x4, scoped, tag = 'scoped memory for tpu_custom_call.1']
    #allocation10 [shape = 'u8[16384]{0}', space=vmem, size = 0x4000, scoped, tag = 'output window, operand 0']
    #allocation11 [shape = 'u8[8192]{0}', space=vmem, size = 0x2000, scoped, tag = 'output window, operand 1']
    #allocation12 [shape = 's32[2]{0}', space=sflag, size = 0x8, scoped, tag = 'scoped memory for tpu_custom_call.1']
    %20 = vsyncpa [#allocation3], 0
    %21 = vsyncpa [#allocation6], 0
    %22 = vsyncpa [#allocation9], 0
    %23 = vsyncpa [#allocation4], 0
    %s24 = scalar_lea.sflag [#allocation4], 1
    %25 = vsyncpa %s24, 0
    %26 = vsyncpa [#allocation12], 0
    %s27 = scalar_lea.sflag [#allocation12], 1
    %28 = vsyncpa %s27, 0
    loop: start=0, step=1, limit=4
    $region2: #{tpu_custom_call.1} parent=1 // loop_pre_header
      _
    $region3: #{tpu_custom_call.1} parent=1 // loop_header
      %s30 = sphi 0, %s34
      %p31 = scmp.ge.s32.totalorder %s30, 4
      %s40 = sphi 0, %s42
      %s43 = sphi 0, %s40
      %s44 = sphi 0, %s43
      %s60 = sphi 0, %s44
      %s66 = sphi 0, %s68
      %s69 = sphi 0, %s66
      %s70 = sphi 0, %s69
      %s86 = sphi 0, %s70
      %s92 = sphi 0, %s94
      %s95 = sphi 0, %s92
      %s96 = sphi 0, %s95
      %s112 = sphi 0, %s96
      %s116 = sphi 0, %s116
      %s118 = sphi 0, %s116
      %s119 = sphi 0, %s118
      %s133 = sphi 0, %s119
      %s137 = sphi 0, %s137
      %s139 = sphi 0, %s137
      %s140 = sphi 0, %s139
      %s154 = sphi 0, %s140
      %s158 = sphi 0, %s158
      %s160 = sphi 0, %s158
      %s161 = sphi 0, %s160
      %s175 = sphi 0, %s161
      %s179 = sphi 0, %s179
      %s181 = sphi 0, %s179
      %s182 = sphi 0, %s181
      %s196 = sphi 0, %s182
      %s200 = sphi 0, %s200
      %s202 = sphi 0, %s200
      %s203 = sphi 0, %s202
      %s217 = sphi 0, %s203
      %s221 = sphi 0, %s221
      %s223 = sphi 0, %s221
      %s224 = sphi 0, %s223
      %s238 = sphi 0, %s224
      %s242 = sphi 0, %s242
      %s244 = sphi 0, %s242
      %s245 = sphi 0, %s244
      %s259 = sphi 0, %s245
      %s263 = sphi 0, %s263
      %s265 = sphi 0, %s263
      %s266 = sphi 0, %s265
      %s280 = sphi 0, %s266
      %s284 = sphi 0, %s284
      %s286 = sphi 0, %s284
      %s287 = sphi 0, %s286
      %s301 = sphi 0, %s287
      %s305 = sphi 0, %s305
      %s307 = sphi 0, %s305
      %s308 = sphi 0, %s307
      %s322 = sphi 0, %s308
      %s328 = sphi 0, %s330
      %s331 = sphi 0, %s328
      %s332 = sphi 0, %s331
      %s348 = sphi 0, %s332
      %s354 = sphi 0, %s356
      %s357 = sphi 0, %s354
      %s358 = sphi 0, %s357
      %s374 = sphi 0, %s358
    $region4: #{tpu_custom_call.1} parent=1 // loop_header_branch
      %33 = sbr.rel (%p31) target = $region8
    $region5: #{tpu_custom_call.1} parent=1 // loop_body
      %s35 = ssub.s32 %s30, 1
      %s36 = ssub.s32 %s30, 2
      %s37 = sadd.s32 %s30, 1
      %s38 = ssub.s32 %s30, %s37
      %p39 = scmp.eq.s32.totalorder %s38, 0
      %s41 = sadd.s32 %s40, 1
      %s42 = scalar_select %p39, %s40, %s41
      %p45 = pneg %p39
      %p46 = scmp.eq.s32.totalorder %s30, 1
      %p47 = por %p45, %p46
      %p48 = scmp.ne.s32.totalorder %s40, %s43
      %p49 = scmp.eq.s32.totalorder %s30, 0
      %p50 = por %p48, %p49
      %p51 = scmp.ne.s32.totalorder %s40, %s43
      %p52 = scmp.eq.s32.totalorder %s35, 1
      %p53 = por %p51, %p52
      %p54 = scmp.ne.s32.totalorder %s43, %s44
      %p55 = scmp.eq.s32.totalorder %s35, 0
      %p56 = por %p54, %p55
      %p57 = scmp.ne.s32.totalorder %s43, %s44
      %p58 = scmp.eq.s32.totalorder %s36, 1
      %p59 = por %p57, %p58
      %p61 = scmp.ne.s32.totalorder %s44, %s60
      %p62 = scmp.eq.s32.totalorder %s36, 0
      %p63 = por %p61, %p62
      %s64 = ssub.s32 %s30, %s37
      %p65 = scmp.eq.s32.totalorder %s64, 0
      %s67 = sadd.s32 %s66, 1
      %s68 = scalar_select %p65, %s66, %s67
      %p71 = pneg %p65
      %p72 = scmp.eq.s32.totalorder %s30, 1
      %p73 = por %p71, %p72
      %p74 = scmp.ne.s32.totalorder %s66, %s69
      %p75 = scmp.eq.s32.totalorder %s30, 0
      %p76 = por %p74, %p75
      %p77 = scmp.ne.s32.totalorder %s66, %s69
      %p78 = scmp.eq.s32.totalorder %s35, 1
      %p79 = por %p77, %p78
      %p80 = scmp.ne.s32.totalorder %s69, %s70
      %p81 = scmp.eq.s32.totalorder %s35, 0
      %p82 = por %p80, %p81
      %p83 = scmp.ne.s32.totalorder %s69, %s70
      %p84 = scmp.eq.s32.totalorder %s36, 1
      %p85 = por %p83, %p84
      %p87 = scmp.ne.s32.totalorder %s70, %s86
      %p88 = scmp.eq.s32.totalorder %s36, 0
      %p89 = por %p87, %p88
      %s90 = ssub.s32 %s30, %s37
      %p91 = scmp.eq.s32.totalorder %s90, 0
      %s93 = sadd.s32 %s92, 1
      %s94 = scalar_select %p91, %s92, %s93
      %p97 = pneg %p91
      %p98 = scmp.eq.s32.totalorder %s30, 1
      %p99 = por %p97, %p98
      %p100 = scmp.ne.s32.totalorder %s92, %s95
      %p101 = scmp.eq.s32.totalorder %s30, 0
      %p102 = por %p100, %p101
      %p103 = scmp.ne.s32.totalorder %s92, %s95
      %p104 = scmp.eq.s32.totalorder %s35, 1
      %p105 = por %p103, %p104
      %p106 = scmp.ne.s32.totalorder %s95, %s96
      %p107 = scmp.eq.s32.totalorder %s35, 0
      %p108 = por %p106, %p107
      %p109 = scmp.ne.s32.totalorder %s95, %s96
      %p110 = scmp.eq.s32.totalorder %s36, 1
      %p111 = por %p109, %p110
      %p113 = scmp.ne.s32.totalorder %s96, %s112
      %p114 = scmp.eq.s32.totalorder %s36, 0
      %p115 = por %p113, %p114
      %s117 = sadd.s32 %s116, 1
      %p120 = scmp.eq.s32.totalorder %s30, 1
      %p121 = scmp.ne.s32.totalorder %s116, %s118
      %p122 = scmp.eq.s32.totalorder %s30, 0
      %p123 = por %p121, %p122
      %p124 = scmp.ne.s32.totalorder %s116, %s118
      %p125 = scmp.eq.s32.totalorder %s35, 1
      %p126 = por %p124, %p125
      %p127 = scmp.ne.s32.totalorder %s118, %s119
      %p128 = scmp.eq.s32.totalorder %s35, 0
      %p129 = por %p127, %p128
      %p130 = scmp.ne.s32.totalorder %s118, %s119
      %p131 = scmp.eq.s32.totalorder %s36, 1
      %p132 = por %p130, %p131
      %p134 = scmp.ne.s32.totalorder %s119, %s133
      %p135 = scmp.eq.s32.totalorder %s36, 0
      %p136 = por %p134, %p135
      %s138 = sadd.s32 %s137, 1
      %p141 = scmp.eq.s32.totalorder %s30, 1
      %p142 = scmp.ne.s32.totalorder %s137, %s139
      %p143 = scmp.eq.s32.totalorder %s30, 0
      %p144 = por %p142, %p143
      %p145 = scmp.ne.s32.totalorder %s137, %s139
      %p146 = scmp.eq.s32.totalorder %s35, 1
      %p147 = por %p145, %p146
      %p148 = scmp.ne.s32.totalorder %s139, %s140
      %p149 = scmp.eq.s32.totalorder %s35, 0
      %p150 = por %p148, %p149
      %p151 = scmp.ne.s32.totalorder %s139, %s140
      %p152 = scmp.eq.s32.totalorder %s36, 1
      %p153 = por %p151, %p152
      %p155 = scmp.ne.s32.totalorder %s140, %s154
      %p156 = scmp.eq.s32.totalorder %s36, 0
      %p157 = por %p155, %p156
      %s159 = sadd.s32 %s158, 1
      %p162 = scmp.eq.s32.totalorder %s30, 1
      %p163 = scmp.ne.s32.totalorder %s158, %s160
      %p164 = scmp.eq.s32.totalorder %s30, 0
      %p165 = por %p163, %p164
      %p166 = scmp.ne.s32.totalorder %s158, %s160
      %p167 = scmp.eq.s32.totalorder %s35, 1
      %p168 = por %p166, %p167
      %p169 = scmp.ne.s32.totalorder %s160, %s161
      %p170 = scmp.eq.s32.totalorder %s35, 0
      %p171 = por %p169, %p170
      %p172 = scmp.ne.s32.totalorder %s160, %s161
      %p173 = scmp.eq.s32.totalorder %s36, 1
      %p174 = por %p172, %p173
      %p176 = scmp.ne.s32.totalorder %s161, %s175
      %p177 = scmp.eq.s32.totalorder %s36, 0
      %p178 = por %p176, %p177
      %s180 = sadd.s32 %s179, 1
      %p183 = scmp.eq.s32.totalorder %s30, 1
      %p184 = scmp.ne.s32.totalorder %s179, %s181
      %p185 = scmp.eq.s32.totalorder %s30, 0
      %p186 = por %p184, %p185
      %p187 = scmp.ne.s32.totalorder %s179, %s181
      %p188 = scmp.eq.s32.totalorder %s35, 1
      %p189 = por %p187, %p188
      %p190 = scmp.ne.s32.totalorder %s181, %s182
      %p191 = scmp.eq.s32.totalorder %s35, 0
      %p192 = por %p190, %p191
      %p193 = scmp.ne.s32.totalorder %s181, %s182
      %p194 = scmp.eq.s32.totalorder %s36, 1
      %p195 = por %p193, %p194
      %p197 = scmp.ne.s32.totalorder %s182, %s196
      %p198 = scmp.eq.s32.totalorder %s36, 0
      %p199 = por %p197, %p198
      %s201 = sadd.s32 %s200, 1
      %p204 = scmp.eq.s32.totalorder %s30, 1
      %p205 = scmp.ne.s32.totalorder %s200, %s202
      %p206 = scmp.eq.s32.totalorder %s30, 0
      %p207 = por %p205, %p206
      %p208 = scmp.ne.s32.totalorder %s200, %s202
      %p209 = scmp.eq.s32.totalorder %s35, 1
      %p210 = por %p208, %p209
      %p211 = scmp.ne.s32.totalorder %s202, %s203
      %p212 = scmp.eq.s32.totalorder %s35, 0
      %p213 = por %p211, %p212
      %p214 = scmp.ne.s32.totalorder %s202, %s203
      %p215 = scmp.eq.s32.totalorder %s36, 1
      %p216 = por %p214, %p215
      %p218 = scmp.ne.s32.totalorder %s203, %s217
      %p219 = scmp.eq.s32.totalorder %s36, 0
      %p220 = por %p218, %p219
      %s222 = sadd.s32 %s221, 1
      %p225 = scmp.eq.s32.totalorder %s30, 1
      %p226 = scmp.ne.s32.totalorder %s221, %s223
      %p227 = scmp.eq.s32.totalorder %s30, 0
      %p228 = por %p226, %p227
      %p229 = scmp.ne.s32.totalorder %s221, %s223
      %p230 = scmp.eq.s32.totalorder %s35, 1
      %p231 = por %p229, %p230
      %p232 = scmp.ne.s32.totalorder %s223, %s224
      %p233 = scmp.eq.s32.totalorder %s35, 0
      %p234 = por %p232, %p233
      %p235 = scmp.ne.s32.totalorder %s223, %s224
      %p236 = scmp.eq.s32.totalorder %s36, 1
      %p237 = por %p235, %p236
      %p239 = scmp.ne.s32.totalorder %s224, %s238
      %p240 = scmp.eq.s32.totalorder %s36, 0
      %p241 = por %p239, %p240
      %s243 = sadd.s32 %s242, 1
      %p246 = scmp.eq.s32.totalorder %s30, 1
      %p247 = scmp.ne.s32.totalorder %s242, %s244
      %p248 = scmp.eq.s32.totalorder %s30, 0
      %p249 = por %p247, %p248
      %p250 = scmp.ne.s32.totalorder %s242, %s244
      %p251 = scmp.eq.s32.totalorder %s35, 1
      %p252 = por %p250, %p251
      %p253 = scmp.ne.s32.totalorder %s244, %s245
      %p254 = scmp.eq.s32.totalorder %s35, 0
      %p255 = por %p253, %p254
      %p256 = scmp.ne.s32.totalorder %s244, %s245
      %p257 = scmp.eq.s32.totalorder %s36, 1
      %p258 = por %p256, %p257
      %p260 = scmp.ne.s32.totalorder %s245, %s259
      %p261 = scmp.eq.s32.totalorder %s36, 0
      %p262 = por %p260, %p261
      %s264 = sadd.s32 %s263, 1
      %p267 = scmp.eq.s32.totalorder %s30, 1
      %p268 = scmp.ne.s32.totalorder %s263, %s265
      %p269 = scmp.eq.s32.totalorder %s30, 0
      %p270 = por %p268, %p269
      %p271 = scmp.ne.s32.totalorder %s263, %s265
      %p272 = scmp.eq.s32.totalorder %s35, 1
      %p273 = por %p271, %p272
      %p274 = scmp.ne.s32.totalorder %s265, %s266
      %p275 = scmp.eq.s32.totalorder %s35, 0
      %p276 = por %p274, %p275
      %p277 = scmp.ne.s32.totalorder %s265, %s266
      %p278 = scmp.eq.s32.totalorder %s36, 1
      %p279 = por %p277, %p278
      %p281 = scmp.ne.s32.totalorder %s266, %s280
      %p282 = scmp.eq.s32.totalorder %s36, 0
      %p283 = por %p281, %p282
      %s285 = sadd.s32 %s284, 1
      %p288 = scmp.eq.s32.totalorder %s30, 1
      %p289 = scmp.ne.s32.totalorder %s284, %s286
      %p290 = scmp.eq.s32.totalorder %s30, 0
      %p291 = por %p289, %p290
      %p292 = scmp.ne.s32.totalorder %s284, %s286
      %p293 = scmp.eq.s32.totalorder %s35, 1
      %p294 = por %p292, %p293
      %p295 = scmp.ne.s32.totalorder %s286, %s287
      %p296 = scmp.eq.s32.totalorder %s35, 0
      %p297 = por %p295, %p296
      %p298 = scmp.ne.s32.totalorder %s286, %s287
      %p299 = scmp.eq.s32.totalorder %s36, 1
      %p300 = por %p298, %p299
      %p302 = scmp.ne.s32.totalorder %s287, %s301
      %p303 = scmp.eq.s32.totalorder %s36, 0
      %p304 = por %p302, %p303
      %s306 = sadd.s32 %s305, 1
      %p309 = scmp.eq.s32.totalorder %s30, 1
      %p310 = scmp.ne.s32.totalorder %s305, %s307
      %p311 = scmp.eq.s32.totalorder %s30, 0
      %p312 = por %p310, %p311
      %p313 = scmp.ne.s32.totalorder %s305, %s307
      %p314 = scmp.eq.s32.totalorder %s35, 1
      %p315 = por %p313, %p314
      %p316 = scmp.ne.s32.totalorder %s307, %s308
      %p317 = scmp.eq.s32.totalorder %s35, 0
      %p318 = por %p316, %p317
      %p319 = scmp.ne.s32.totalorder %s307, %s308
      %p320 = scmp.eq.s32.totalorder %s36, 1
      %p321 = por %p319, %p320
      %p323 = scmp.ne.s32.totalorder %s308, %s322
      %p324 = scmp.eq.s32.totalorder %s36, 0
      %p325 = por %p323, %p324
      %s326 = ssub.s32 %s30, %s37
      %p327 = scmp.eq.s32.totalorder %s326, 0
      %s329 = sadd.s32 %s328, 1
      %s330 = scalar_select %p327, %s328, %s329
      %p333 = pneg %p327
      %p334 = scmp.eq.s32.totalorder %s30, 1
      %p335 = por %p333, %p334
      %p336 = scmp.ne.s32.totalorder %s328, %s331
      %p337 = scmp.eq.s32.totalorder %s30, 0
      %p338 = por %p336, %p337
      %p339 = scmp.ne.s32.totalorder %s328, %s331
      %p340 = scmp.eq.s32.totalorder %s35, 1
      %p341 = por %p339, %p340
      %p342 = scmp.ne.s32.totalorder %s331, %s332
      %p343 = scmp.eq.s32.totalorder %s35, 0
      %p344 = por %p342, %p343
      %p345 = scmp.ne.s32.totalorder %s331, %s332
      %p346 = scmp.eq.s32.totalorder %s36, 1
      %p347 = por %p345, %p346
      %p349 = scmp.ne.s32.totalorder %s332, %s348
      %p350 = scmp.eq.s32.totalorder %s36, 0
      %p351 = por %p349, %p350
      %s352 = ssub.s32 %s30, %s37
      %p353 = scmp.eq.s32.totalorder %s352, 0
      %s355 = sadd.s32 %s354, 1
      %s356 = scalar_select %p353, %s354, %s355
      %p359 = pneg %p353
      %p360 = scmp.eq.s32.totalorder %s30, 1
      %p361 = por %p359, %p360
      %p362 = scmp.ne.s32.totalorder %s354, %s357
      %p363 = scmp.eq.s32.totalorder %s30, 0
      %p364 = por %p362, %p363
      %p365 = scmp.ne.s32.totalorder %s354, %s357
      %p366 = scmp.eq.s32.totalorder %s35, 1
      %p367 = por %p365, %p366
      %p368 = scmp.ne.s32.totalorder %s357, %s358
      %p369 = scmp.eq.s32.totalorder %s35, 0
      %p370 = por %p368, %p369
      %p371 = scmp.ne.s32.totalorder %s357, %s358
      %p372 = scmp.eq.s32.totalorder %s36, 1
      %p373 = por %p371, %p372
      %p375 = scmp.ne.s32.totalorder %s358, %s374
      %p376 = scmp.eq.s32.totalorder %s36, 0
      %p377 = por %p375, %p376
      %p378 = scmp.le.s32.totalorder 1, %s30
      %p379 = scmp.lt.s32.totalorder %s30, 3
      %p380 = pnand %p378, %p379
      %p381 = pneg %p380
      // Predicated region
      $region9: #{tpu_custom_call.1} parent=5 // pred_check
        _
      $region10: #{tpu_custom_call.1} parent=5 // pred_check_branch
        %383 = sbr.rel (%p380) target = $region12
      $region11: #{tpu_custom_call.1} parent=5 // pred_region
        %s384 = ssub.s32 %s30, 1
        // Predicated region
        $region13: #{tpu_custom_call.1} parent=11 // pred_check
          %p385 = pneg %p129
        $region14: #{tpu_custom_call.1} parent=11 // pred_check_branch
          %387 = sbr.rel (%p385) target = $region16
        $region15: #{tpu_custom_call.1} parent=11 // pred_region
          _
        $region16: #{tpu_custom_call.1} parent=11 // pred_fallthru
          _
        // Predicated region
        $region17: #{tpu_custom_call.1} parent=11 // pred_check
          %p388 = pneg %p150
        $region18: #{tpu_custom_call.1} parent=11 // pred_check_branch
          %390 = sbr.rel (%p388) target = $region20
        $region19: #{tpu_custom_call.1} parent=11 // pred_region
          %s392 = ssub.s32 128, 128
          %393 = vsyncadd [#allocation3], %s392
          %s394 = sshll.u32 [#allocation2], 4
          %s395 = int_to_ptr.vmem [resolvable:$true] %s394
          %400 = dma.hbm_to_vmem [thread:$0]  %s4, 128, %s395, [#allocation3], 64, 64, 4
        $region20: #{tpu_custom_call.1} parent=11 // pred_fallthru
          _
        // Predicated region
        $region21: #{tpu_custom_call.1} parent=11 // pred_check
          %p401 = pneg %p171
        $region22: #{tpu_custom_call.1} parent=11 // pred_check_branch
          %403 = sbr.rel (%p401) target = $region24
        $region23: #{tpu_custom_call.1} parent=11 // pred_region
          %s405 = ssub.s32 16, 16
          %406 = vsyncadd [#allocation6], %s405
          %s408 = sshll.u32 [#allocation5], 4
          %s409 = int_to_ptr.vmem [resolvable:$true] %s408
          %411 = dma.hbm_to_vmem [thread:$0]  %s5, 16, %s409, [#allocation6]
        $region24: #{tpu_custom_call.1} parent=11 // pred_fallthru
          _
        // Predicated region
        $region25: #{tpu_custom_call.1} parent=11 // pred_check
          %p412 = pneg %p192
        $region26: #{tpu_custom_call.1} parent=11 // pred_check_branch
          %414 = sbr.rel (%p412) target = $region28
        $region27: #{tpu_custom_call.1} parent=11 // pred_region
          _
        $region28: #{tpu_custom_call.1} parent=11 // pred_fallthru
          _
        // Predicated region
        $region29: #{tpu_custom_call.1} parent=11 // pred_check
          %p415 = pneg %p213
        $region30: #{tpu_custom_call.1} parent=11 // pred_check_branch
          %417 = sbr.rel (%p415) target = $region32
        $region31: #{tpu_custom_call.1} parent=11 // pred_region
          %s419 = ssub.s32 16, 16
          %420 = vsyncadd [#allocation6], %s419
          %s422 = sshll.u32 [#allocation7], 4
          %s423 = int_to_ptr.vmem [resolvable:$true] %s422
          %425 = dma.hbm_to_vmem [thread:$0]  %s7, 16, %s423, [#allocation6]
        $region32: #{tpu_custom_call.1} parent=11 // pred_fallthru
          _
        // Predicated region
        $region33: #{tpu_custom_call.1} parent=11 // pred_check
          %p426 = pneg %p234
        $region34: #{tpu_custom_call.1} parent=11 // pred_check_branch
          %428 = sbr.rel (%p426) target = $region36
        $region35: #{tpu_custom_call.1} parent=11 // pred_region
          _
        $region36: #{tpu_custom_call.1} parent=11 // pred_fallthru
          _
        // Predicated region
        $region37: #{tpu_custom_call.1} parent=11 // pred_check
          %p429 = pneg %p255
        $region38: #{tpu_custom_call.1} parent=11 // pred_check_branch
          %431 = sbr.rel (%p429) target = $region40
        $region39: #{tpu_custom_call.1} parent=11 // pred_region
          _
        $region40: #{tpu_custom_call.1} parent=11 // pred_fallthru
          _
        // Predicated region
        $region41: #{tpu_custom_call.1} parent=11 // pred_check
          %p432 = pneg %p276
        $region42: #{tpu_custom_call.1} parent=11 // pred_check_branch
          %434 = sbr.rel (%p432) target = $region44
        $region43: #{tpu_custom_call.1} parent=11 // pred_region
          _
        $region44: #{tpu_custom_call.1} parent=11 // pred_fallthru
          _
        // Predicated region
        $region45: #{tpu_custom_call.1} parent=11 // pred_check
          %p435 = pneg %p297
        $region46: #{tpu_custom_call.1} parent=11 // pred_check_branch
          %437 = sbr.rel (%p435) target = $region48
        $region47: #{tpu_custom_call.1} parent=11 // pred_region
          %s439 = ssub.s32 2048, 2048
          %440 = vsyncadd [#allocation9], %s439
          %s441 = sshll.u32 [#allocation8], 4
          %s442 = int_to_ptr.vmem [resolvable:$true] %s441
          %447 = dma.hbm_to_vmem [thread:$0]  %s11, 2048, %s442, [#allocation9], 128, 128, 8
        $region48: #{tpu_custom_call.1} parent=11 // pred_fallthru
          _
        // Predicated region
        $region49: #{tpu_custom_call.1} parent=11 // pred_check
          %p448 = pneg %p318
        $region50: #{tpu_custom_call.1} parent=11 // pred_check_branch
          %450 = sbr.rel (%p448) target = $region52
        $region51: #{tpu_custom_call.1} parent=11 // pred_region
          _
        $region52: #{tpu_custom_call.1} parent=11 // pred_fallthru
          _
      $region12: #{tpu_custom_call.1} parent=5 // pred_fallthru
        _
      %p451 = scmp.lt.s32.totalorder %s30, 2
      // Predicated region
      $region53: #{tpu_custom_call.1} parent=5 // pred_check
        %p452 = pneg %p451
      $region54: #{tpu_custom_call.1} parent=5 // pred_check_branch
        %454 = sbr.rel (%p452) target = $region56
      $region55: #{tpu_custom_call.1} parent=5 // pred_region
        // Predicated region
        $region57: #{tpu_custom_call.1} parent=55 // pred_check
          %p455 = pneg %p50
        $region58: #{tpu_custom_call.1} parent=55 // pred_check_branch
          %457 = sbr.rel (%p455) target = $region60
        $region59: #{tpu_custom_call.1} parent=55 // pred_region
          %s458 = smul.u32 2, %s30
          %p459 = scmp.lt.s32.totalorder %s458, 3
          %s460 = scalar_select %p459, %s458, 3
          %s461 = smul.addr %s460, 2
          %s462 = smul.addr %s461, 4
          %s463 = scalar_lea.vmem %s0, %s462
          %s464 = smul.u32 2, %s30
        $region60: #{tpu_custom_call.1} parent=55 // pred_fallthru
          _
        // Predicated region
        $region61: #{tpu_custom_call.1} parent=55 // pred_check
          %p465 = pneg %p76
        $region62: #{tpu_custom_call.1} parent=55 // pred_check_branch
          %467 = sbr.rel (%p465) target = $region64
        $region63: #{tpu_custom_call.1} parent=55 // pred_region
          %s468 = smul.u32 2, %s30
          %p469 = scmp.lt.s32.totalorder %s468, 3
          %s470 = scalar_select %p469, %s468, 3
          %s471 = smul.addr %s470, 4
          %s472 = scalar_lea.vmem %s1, %s471
          %s473 = smul.u32 2, %s30
        $region64: #{tpu_custom_call.1} parent=55 // pred_fallthru
          _
        // Predicated region
        $region65: #{tpu_custom_call.1} parent=55 // pred_check
          %p474 = pneg %p102
        $region66: #{tpu_custom_call.1} parent=55 // pred_check_branch
          %476 = sbr.rel (%p474) target = $region68
        $region67: #{tpu_custom_call.1} parent=55 // pred_region
          %s477 = smul.u32 2, %s30
          %p478 = scmp.lt.s32.totalorder %s477, 3
          %s479 = scalar_select %p478, %s477, 3
          %s480 = smul.addr %s479, 8
          %s481 = scalar_lea.vmem %s2, %s480
          %s482 = smul.u32 2, %s30
        $region68: #{tpu_custom_call.1} parent=55 // pred_fallthru
          _
      $region56: #{tpu_custom_call.1} parent=5 // pred_fallthru
        _
      %p483 = scmp.le.s32.totalorder 1, %s30
      %p484 = scmp.lt.s32.totalorder %s30, 3
      %p485 = pnand %p483, %p484
      %p486 = pneg %p485
      // Predicated region
      $region69: #{tpu_custom_call.1} parent=5 // pred_check
        _
      $region70: #{tpu_custom_call.1} parent=5 // pred_check_branch
        %488 = sbr.rel (%p485) target = $region72
      $region71: #{tpu_custom_call.1} parent=5 // pred_region
        %s489 = ssub.s32 %s30, 1
        // Predicated region
        $region73: #{tpu_custom_call.1} parent=71 // pred_check
          %p490 = pneg %p150
        $region74: #{tpu_custom_call.1} parent=71 // pred_check_branch
          %492 = sbr.rel (%p490) target = $region76
        $region75: #{tpu_custom_call.1} parent=71 // pred_region
          %493 = dma.done [#allocation3], 128
        $region76: #{tpu_custom_call.1} parent=71 // pred_fallthru
          _
        // Predicated region
        $region77: #{tpu_custom_call.1} parent=71 // pred_check
          %p494 = pneg %p171
        $region78: #{tpu_custom_call.1} parent=71 // pred_check_branch
          %496 = sbr.rel (%p494) target = $region80
        $region79: #{tpu_custom_call.1} parent=71 // pred_region
          %497 = dma.done [#allocation6], 16
        $region80: #{tpu_custom_call.1} parent=71 // pred_fallthru
          _
        // Predicated region
        $region81: #{tpu_custom_call.1} parent=71 // pred_check
          %p498 = pneg %p213
        $region82: #{tpu_custom_call.1} parent=71 // pred_check_branch
          %500 = sbr.rel (%p498) target = $region84
        $region83: #{tpu_custom_call.1} parent=71 // pred_region
          %501 = dma.done [#allocation6], 16
        $region84: #{tpu_custom_call.1} parent=71 // pred_fallthru
          _
        // Predicated region
        $region85: #{tpu_custom_call.1} parent=71 // pred_check
          %p502 = pneg %p297
        $region86: #{tpu_custom_call.1} parent=71 // pred_check_branch
          %504 = sbr.rel (%p502) target = $region88
        $region87: #{tpu_custom_call.1} parent=71 // pred_region
          %505 = dma.done [#allocation9], 2048
        $region88: #{tpu_custom_call.1} parent=71 // pred_fallthru
          _
        %s506 = smul.u32 2, %s35
        %p507 = scmp.lt.s32.totalorder %s506, 3
        %s508 = scalar_select %p507, %s506, 3
        %s509 = smul.addr %s508, 2
        %s510 = smul.addr %s509, 4
        %s511 = scalar_lea.vmem %s0, %s510
        %p512 = pneg %p56
        %p513 = pneg %p53
        %s514 = smul.u32 2, %s35
        %p515 = scmp.lt.s32.totalorder %s514, 3
        %s516 = scalar_select %p515, %s514, 3
        %s517 = smul.addr %s516, 4
        %s518 = scalar_lea.vmem %s1, %s517
        %p519 = pneg %p82
        %p520 = pneg %p79
        %s521 = smul.u32 2, %s35
        %p522 = scmp.lt.s32.totalorder %s521, 3
        %s523 = scalar_select %p522, %s521, 3
        %s524 = smul.addr %s523, 8
        %s525 = scalar_lea.vmem %s2, %s524
        %p526 = pneg %p108
        %p527 = pneg %p105
        %p528 = pneg %p129
        %p529 = pneg %p126
        %p530 = pneg %p150
        %p531 = pneg %p147
        %p532 = pneg %p171
        %p533 = pneg %p168
        %p534 = pneg %p192
        %p535 = pneg %p189
        %p536 = pneg %p213
        %p537 = pneg %p210
        %p538 = pneg %p234
        %p539 = pneg %p231
        %p540 = pneg %p255
        %p541 = pneg %p252
        %p542 = pneg %p276
        %p543 = pneg %p273
        %p544 = pneg %p297
        %p545 = pneg %p294
        %p546 = pneg %p318
        %p547 = pneg %p315
        %p548 = pneg %p344
        %p549 = pneg %p341
        %s550 = sand.u32 %s331, 1
        %s551 = scalar_lea.sflag [#allocation4], %s550
        %s552 = sand.u32 %s331, 1
        %s553 = smul.addr %s552, 16
        %s554 = scalar_lea.vmem [#allocation10], %s553
        %p555 = pneg %p370
        %p556 = pneg %p367
        %s557 = sand.u32 %s357, 1
        %s558 = scalar_lea.sflag [#allocation12], %s557
        %s559 = sand.u32 %s357, 1
        %s560 = smul.addr %s559, 8
        %s561 = scalar_lea.vmem [#allocation11], %s560
        %s562 = smul.u32 2, %s35
        %p563 = scmp.lt.s32.totalorder %s562, 3
        %s564 = scalar_select %p563, %s562, 3
        %s565 = smul.addr %s564, 2
        %s566 = smul.addr %s565, 4
        %s567 = scalar_lea.vmem %s0, %s566
        %s568 = smul.u32 2, %s35
        %s569 = smul.u32 2, %s35
        %p570 = scmp.lt.s32.totalorder %s569, 3
        %s571 = scalar_select %p570, %s569, 3
        %s572 = smul.addr %s571, 4
        %s573 = scalar_lea.vmem %s1, %s572
        %s574 = smul.u32 2, %s35
        %s575 = smul.u32 2, %s35
        %p576 = scmp.lt.s32.totalorder %s575, 3
        %s577 = scalar_select %p576, %s575, 3
        %s578 = smul.addr %s577, 8
        %s579 = scalar_lea.vmem %s2, %s578
        %s580 = smul.u32 2, %s35
        %s581 = smul.u32 2, %s35
        %s582 = smul.u32 2, %s35
        %v584 = vld [vmem:[%s573] sm:$0xf]
        %v585 = vld [vmem:[%s573 + $0x4] sm:$0xf]
        %v586 = vld [vmem:[%s567] sm:$0xff]
        %v587 = vld [vmem:[%s567 + $0x8] sm:$0xff]
        %v588 = vld [vmem:[%s3] sm:$0xf]
        %v589 = vld [vmem:[%s3 + $0x4] sm:$0xf]
        %v590 = vld [vmem:[%s3 + $0x8] sm:$0xf]
        %v591 = vld [vmem:[%s3 + $0xc] sm:$0xf]
        %v592 = vld [vmem:[%s3 + $0x10] sm:$0xf]
        %v593 = vld [vmem:[%s3 + $0x14] sm:$0xf]
        %v594 = vld [vmem:[%s3 + $0x18] sm:$0xf]
        %v595 = vld [vmem:[%s3 + $0x1c] sm:$0xf]
        %v596 = vld [vmem:[%s3 + $0x20] sm:$0xf]
        %v597 = vld [vmem:[%s3 + $0x24] sm:$0xf]
        %v598 = vld [vmem:[%s3 + $0x28] sm:$0xf]
        %v599 = vld [vmem:[%s3 + $0x2c] sm:$0xf]
        %v600 = vld [vmem:[%s3 + $0x30] sm:$0xf]
        %v601 = vld [vmem:[%s3 + $0x34] sm:$0xf]
        %v602 = vld [vmem:[%s3 + $0x38] sm:$0xf]
        %v603 = vld [vmem:[%s3 + $0x3c] sm:$0xf]
        %v604 = vld [vmem:[%s3 + $0x40] sm:$0xf]
        %v605 = vld [vmem:[%s3 + $0x44] sm:$0xf]
        %v606 = vld [vmem:[%s3 + $0x48] sm:$0xf]
        %v607 = vld [vmem:[%s3 + $0x4c] sm:$0xf]
        %v608 = vld [vmem:[%s3 + $0x50] sm:$0xf]
        %v609 = vld [vmem:[%s3 + $0x54] sm:$0xf]
        %v610 = vld [vmem:[%s3 + $0x58] sm:$0xf]
        %v611 = vld [vmem:[%s3 + $0x5c] sm:$0xf]
        %v612 = vld [vmem:[%s3 + $0x60] sm:$0xf]
        %v613 = vld [vmem:[%s3 + $0x64] sm:$0xf]
        %v614 = vld [vmem:[%s3 + $0x68] sm:$0xf]
        %v615 = vld [vmem:[%s3 + $0x6c] sm:$0xf]
        %v616 = vld [vmem:[%s3 + $0x70] sm:$0xf]
        %v617 = vld [vmem:[%s3 + $0x74] sm:$0xf]
        %v618 = vld [vmem:[%s3 + $0x78] sm:$0xf]
        %v619 = vld [vmem:[%s3 + $0x7c] sm:$0xf]
        %v620 = vld [vmem:[#allocation2] sm:$0xf]
        %v621 = vld [vmem:[#allocation2 + $0x4] sm:$0x1]
        %v624 = vunpack.c.l.b16 %v584
        %v625 = vunpack.c.l.b16 %v585
        %v626 = vpack.c.b16 %v625, %v624
        %v629 = vunpack.c.l.b16 %v620
        %v630 = vunpack.c.l.b16 %v621
        %v631 = vpack.c.b16 %v630, %v629
        %vm632 = vcmask 80896
        %v634 = vsel %vm632, %v626, 0
        %vm636 = vcmask 1044480
        %v638 = vsel %vm636, %v631, 0
        %640 = vmatprep.subr.bf16.mxu0 0
        %641 = vmatpush1.bf16.msra.mxu0 %v638
        %642 = vmatprep.subr.bf16.mxu0 0
        %643 = vmatpush1.bf16.msra.mxu0 0
        %644 = vmatprep.subr.bf16.mxu0 0
        %645 = vmatpush1.bf16.msra.mxu0 0
        %646 = vmatprep.subr.bf16.mxu0 0
        %647 = vmatpush1.bf16.msra.mxu0 0
        %648 = vmatprep.subr.bf16.mxu0 0
        %649 = vmatpush1.bf16.msra.mxu0 0
        %650 = vmatprep.subr.bf16.mxu0 0
        %651 = vmatpush1.bf16.msra.mxu0 0
        %652 = vmatprep.subr.bf16.mxu0 0
        %653 = vmatpush1.bf16.msra.mxu0 0
        %654 = vmatprep.subr.bf16.mxu0 0
        %655 = vmatpush1.bf16.msra.mxu0 0
        %656 = vmatprep.subr.bf16.mxu0 0
        %657 = vmatpush1.bf16.msra.mxu0 0
        %658 = vmatprep.subr.bf16.mxu0 0
        %659 = vmatpush1.bf16.msra.mxu0 0
        %660 = vmatprep.subr.bf16.mxu0 0
        %661 = vmatpush1.bf16.msra.mxu0 0
        %662 = vmatprep.subr.bf16.mxu0 0
        %663 = vmatpush1.bf16.msra.mxu0 0
        %664 = vmatprep.subr.bf16.mxu0 0
        %665 = vmatpush1.bf16.msra.mxu0 0
        %666 = vmatprep.subr.bf16.mxu0 0
        %667 = vmatpush1.bf16.msra.mxu0 0
        %668 = vmatprep.subr.bf16.mxu0 0
        %669 = vmatpush1.bf16.msra.mxu0 0
        %670 = vmatprep.subr.bf16.mxu0 0
        %671 = vmatpush1.bf16.msra.mxu0 0
        %672 = vmatprep.mubr.bf16.mxu0 0
        %673 = vmatmul.mubr.bf16.gmra.mrb[0].mxu0 %v634
        %v674 = vpop.f32.mrb[0].mxu0
        %v675 = vadd.f32 0.0, %v674
        %v676 = vpop.f32.mrb[0].mxu0
        %v677 = vpop.f32.mrb[0].mxu0
        %v678 = vadd.f32 0.0, %v677
        %v679 = vpop.f32.mrb[0].mxu0
        %680 = vdwg.mxu0
        %v683 = vunpack.c.l.b16 %v586
        %v684 = vunpack.c.h.b16 %v586
        %v685 = vunpack.c.l.b16 %v587
        %v686 = vunpack.c.h.b16 %v587
        %v687 = vpack.c.b16 %v685, %v683
        %v688 = vpack.c.b16 %v686, %v684
        %v723 = vunpack.c.l.b16 %v588
        %v724 = vunpack.c.l.b16 %v589
        %v725 = vunpack.c.l.b16 %v590
        %v726 = vunpack.c.l.b16 %v591
        %v727 = vunpack.c.l.b16 %v592
        %v728 = vunpack.c.l.b16 %v593
        %v729 = vunpack.c.l.b16 %v594
        %v730 = vunpack.c.l.b16 %v595
        %v731 = vunpack.c.l.b16 %v596
        %v732 = vunpack.c.l.b16 %v597
        %v733 = vunpack.c.l.b16 %v598
        %v734 = vunpack.c.l.b16 %v599
        %v735 = vunpack.c.l.b16 %v600
        %v736 = vunpack.c.l.b16 %v601
        %v737 = vunpack.c.l.b16 %v602
        %v738 = vunpack.c.l.b16 %v603
        %v739 = vunpack.c.l.b16 %v604
        %v740 = vunpack.c.l.b16 %v605
        %v741 = vunpack.c.l.b16 %v606
        %v742 = vunpack.c.l.b16 %v607
        %v743 = vunpack.c.l.b16 %v608
        %v744 = vunpack.c.l.b16 %v609
        %v745 = vunpack.c.l.b16 %v610
        %v746 = vunpack.c.l.b16 %v611
        %v747 = vunpack.c.l.b16 %v612
        %v748 = vunpack.c.l.b16 %v613
        %v749 = vunpack.c.l.b16 %v614
        %v750 = vunpack.c.l.b16 %v615
        %v751 = vunpack.c.l.b16 %v616
        %v752 = vunpack.c.l.b16 %v617
        %v753 = vunpack.c.l.b16 %v618
        %v754 = vunpack.c.l.b16 %v619
        %v755 = vpack.c.b16 %v724, %v723
        %v756 = vpack.c.b16 %v726, %v725
        %v757 = vpack.c.b16 %v728, %v727
        %v758 = vpack.c.b16 %v730, %v729
        %v759 = vpack.c.b16 %v732, %v731
        %v760 = vpack.c.b16 %v734, %v733
        %v761 = vpack.c.b16 %v736, %v735
        %v762 = vpack.c.b16 %v738, %v737
        %v763 = vpack.c.b16 %v740, %v739
        %v764 = vpack.c.b16 %v742, %v741
        %v765 = vpack.c.b16 %v744, %v743
        %v766 = vpack.c.b16 %v746, %v745
        %v767 = vpack.c.b16 %v748, %v747
        %v768 = vpack.c.b16 %v750, %v749
        %v769 = vpack.c.b16 %v752, %v751
        %v770 = vpack.c.b16 %v754, %v753
        %787 = vmatprep.subr.bf16.mxu0 0
        %788 = vmatpush1.bf16.msra.mxu0 %v755
        %789 = vmatprep.subr.bf16.mxu0 0
        %790 = vmatpush1.bf16.msra.mxu0 %v756
        %791 = vmatprep.subr.bf16.mxu0 0
        %792 = vmatpush1.bf16.msra.mxu0 %v757
        %793 = vmatprep.subr.bf16.mxu0 0
        %794 = vmatpush1.bf16.msra.mxu0 %v758
        %795 = vmatprep.subr.bf16.mxu0 0
        %796 = vmatpush1.bf16.msra.mxu0 %v759
        %797 = vmatprep.subr.bf16.mxu0 0
        %798 = vmatpush1.bf16.msra.mxu0 %v760
        %799 = vmatprep.subr.bf16.mxu0 0
        %800 = vmatpush1.bf16.msra.mxu0 %v761
        %801 = vmatprep.subr.bf16.mxu0 0
        %802 = vmatpush1.bf16.msra.mxu0 %v762
        %803 = vmatprep.subr.bf16.mxu0 0
        %804 = vmatpush1.bf16.msra.mxu0 %v763
        %805 = vmatprep.subr.bf16.mxu0 0
        %806 = vmatpush1.bf16.msra.mxu0 %v764
        %807 = vmatprep.subr.bf16.mxu0 0
        %808 = vmatpush1.bf16.msra.mxu0 %v765
        %809 = vmatprep.subr.bf16.mxu0 0
        %810 = vmatpush1.bf16.msra.mxu0 %v766
        %811 = vmatprep.subr.bf16.mxu0 0
        %812 = vmatpush1.bf16.msra.mxu0 %v767
        %813 = vmatprep.subr.bf16.mxu0 0
        %814 = vmatpush1.bf16.msra.mxu0 %v768
        %815 = vmatprep.subr.bf16.mxu0 0
        %816 = vmatpush1.bf16.msra.mxu0 %v769
        %817 = vmatprep.subr.bf16.mxu0 0
        %818 = vmatpush1.bf16.msra.mxu0 %v770
        %819 = vmatprep.mubr.bf16.mxu0 %v688
        %820 = vmatmul.mubr.bf16.gmra.mrb[0].mxu0 %v687
        %v821 = vpop.f32.mrb[0].mxu0
        %v822 = vadd.f32 %v675, %v821
        %v823 = vpop.f32.mrb[0].mxu0
        %v824 = vpop.f32.mrb[0].mxu0
        %v825 = vadd.f32 %v678, %v824
        %v826 = vpop.f32.mrb[0].mxu0
        %827 = vdwg.mxu0
        %v828 = vld [vmem:[#allocation5] sm:$0x1]
        %v830 = vlaneseq
        %v831 = vshrl.u32 %v830, 7
        %v832 = vsub.s32 0, %v831
        %v833 = vrot.slane %v828, %v832
        %v835 = vadd.f32 %v822, %v833
        %v836 = vadd.f32 %v825, %v833
        %v837 = vmax.f32 %v835, 0.0
        %v838 = vmax.f32 %v836, 0.0
        %v839 = vpack.c.bf16 %v838, %v837
        %v840 = vld [vmem:[%s6] sm:$0xf]
        %v841 = vld [vmem:[%s6 + $0x4] sm:$0xf]
        %v842 = vld [vmem:[%s6 + $0x8] sm:$0xf]
        %v843 = vld [vmem:[%s6 + $0xc] sm:$0xf]
        %v844 = vld [vmem:[%s6 + $0x10] sm:$0xf]
        %v845 = vld [vmem:[%s6 + $0x14] sm:$0xf]
        %v846 = vld [vmem:[%s6 + $0x18] sm:$0xf]
        %v847 = vld [vmem:[%s6 + $0x1c] sm:$0xf]
        %v848 = vld [vmem:[%s6 + $0x20] sm:$0xf]
        %v849 = vld [vmem:[%s6 + $0x24] sm:$0xf]
        %v850 = vld [vmem:[%s6 + $0x28] sm:$0xf]
        %v851 = vld [vmem:[%s6 + $0x2c] sm:$0xf]
        %v852 = vld [vmem:[%s6 + $0x30] sm:$0xf]
        %v853 = vld [vmem:[%s6 + $0x34] sm:$0xf]
        %v854 = vld [vmem:[%s6 + $0x38] sm:$0xf]
        %v855 = vld [vmem:[%s6 + $0x3c] sm:$0xf]
        %v856 = vld [vmem:[#allocation7] sm:$0x1]
        %v858 = vlaneseq
        %v859 = vshrl.u32 %v858, 7
        %v860 = vsub.s32 0, %v859
        %v861 = vrot.slane %v856, %v860
        %v879 = vunpack.c.l.b16 %v840
        %v880 = vunpack.c.l.b16 %v841
        %v881 = vunpack.c.l.b16 %v842
        %v882 = vunpack.c.l.b16 %v843
        %v883 = vunpack.c.l.b16 %v844
        %v884 = vunpack.c.l.b16 %v845
        %v885 = vunpack.c.l.b16 %v846
        %v886 = vunpack.c.l.b16 %v847
        %v887 = vunpack.c.l.b16 %v848
        %v888 = vunpack.c.l.b16 %v849
        %v889 = vunpack.c.l.b16 %v850
        %v890 = vunpack.c.l.b16 %v851
        %v891 = vunpack.c.l.b16 %v852
        %v892 = vunpack.c.l.b16 %v853
        %v893 = vunpack.c.l.b16 %v854
        %v894 = vunpack.c.l.b16 %v855
        %v895 = vpack.c.b16 %v880, %v879
        %v896 = vpack.c.b16 %v882, %v881
        %v897 = vpack.c.b16 %v884, %v883
        %v898 = vpack.c.b16 %v886, %v885
        %v899 = vpack.c.b16 %v888, %v887
        %v900 = vpack.c.b16 %v890, %v889
        %v901 = vpack.c.b16 %v892, %v891
        %v902 = vpack.c.b16 %v894, %v893
        %911 = vmatprep.subr.bf16.mxu0 0
        %912 = vmatpush1.bf16.msra.mxu0 %v895
        %913 = vmatprep.subr.bf16.mxu0 0
        %914 = vmatpush1.bf16.msra.mxu0 %v896
        %915 = vmatprep.subr.bf16.mxu0 0
        %916 = vmatpush1.bf16.msra.mxu0 %v897
        %917 = vmatprep.subr.bf16.mxu0 0
        %918 = vmatpush1.bf16.msra.mxu0 %v898
        %919 = vmatprep.subr.bf16.mxu0 0
        %920 = vmatpush1.bf16.msra.mxu0 %v899
        %921 = vmatprep.subr.bf16.mxu0 0
        %922 = vmatpush1.bf16.msra.mxu0 %v900
        %923 = vmatprep.subr.bf16.mxu0 0
        %924 = vmatpush1.bf16.msra.mxu0 %v901
        %925 = vmatprep.subr.bf16.mxu0 0
        %926 = vmatpush1.bf16.msra.mxu0 %v902
        %927 = vmatprep.subr.bf16.mxu0 0
        %928 = vmatpush1.bf16.msra.mxu0 0
        %929 = vmatprep.subr.bf16.mxu0 0
        %930 = vmatpush1.bf16.msra.mxu0 0
        %931 = vmatprep.subr.bf16.mxu0 0
        %932 = vmatpush1.bf16.msra.mxu0 0
        %933 = vmatprep.subr.bf16.mxu0 0
        %934 = vmatpush1.bf16.msra.mxu0 0
        %935 = vmatprep.subr.bf16.mxu0 0
        %936 = vmatpush1.bf16.msra.mxu0 0
        %937 = vmatprep.subr.bf16.mxu0 0
        %938 = vmatpush1.bf16.msra.mxu0 0
        %939 = vmatprep.subr.bf16.mxu0 0
        %940 = vmatpush1.bf16.msra.mxu0 0
        %941 = vmatprep.subr.bf16.mxu0 0
        %942 = vmatpush1.bf16.msra.mxu0 0
        %943 = vmatprep.mubr.bf16.mxu0 0
        %944 = vmatmul.mubr.bf16.gmra.mrb[0].mxu0 %v839
        %v945 = vpop.f32.mrb[0].mxu0
        %v946 = vadd.f32 %v861, %v945
        %v947 = vpop.f32.mrb[0].mxu0
        %v948 = vpop.f32.mrb[0].mxu0
        %v949 = vadd.f32 %v861, %v948
        %v950 = vpop.f32.mrb[0].mxu0
        %951 = vdwg.mxu0
        %v952 = vmul.f32 %v946, 0.5
        %v953 = vmul.f32 %v949, 0.5
        %v954 = vmul.f32 %v952, 1.442695
        %v955 = vpow.pop %v954
        %v956 = vmul.f32 %v953, 1.442695
        %v957 = vpow.pop %v956
        %v958 = vld [vmem:[%s579] sm:$0xff]
        %v959 = vld [vmem:[%s579 + $0x8] sm:$0xff]
        %962 = vrot.lane.b32.xlu0 %v955, 112
        %v963 = vpop.permute.xlu0 %962
        %964 = vrot.lane.b32.xlu0 %v957, 112
        %v965 = vpop.permute.xlu0 %964
        %v968 = vmul.f32 %v958, %v963
        %v969 = vmul.f32 %v959, %v965
        %v970 = vadd.f32 %v946, %v968
        %v971 = vadd.f32 %v949, %v969
        %v972 = vpack.c.bf16 %v971, %v970
        %v973 = vld [vmem:[%s8] sm:$0xf]
        %v974 = vld [vmem:[%s8 + $0x4] sm:$0xf]
        %v975 = vld [vmem:[%s9] sm:$0xf]
        %v976 = vld [vmem:[%s9 + $0x4] sm:$0x1]
        %v979 = vunpack.c.l.b16 %v975
        %v980 = vunpack.c.l.b16 %v976
        %v981 = vpack.c.b16 %v980, %v979
        %v983 = vsel %vm636, %v981, 0
        %985 = vmatprep.subr.bf16.mxu0 0
        %986 = vmatpush1.bf16.msra.mxu0 %v983
        %987 = vmatprep.subr.bf16.mxu0 0
        %988 = vmatpush1.bf16.msra.mxu0 0
        %989 = vmatprep.subr.bf16.mxu0 0
        %990 = vmatpush1.bf16.msra.mxu0 0
        %991 = vmatprep.subr.bf16.mxu0 0
        %992 = vmatpush1.bf16.msra.mxu0 0
        %993 = vmatprep.subr.bf16.mxu0 0
        %994 = vmatpush1.bf16.msra.mxu0 0
        %995 = vmatprep.subr.bf16.mxu0 0
        %996 = vmatpush1.bf16.msra.mxu0 0
        %997 = vmatprep.subr.bf16.mxu0 0
        %998 = vmatpush1.bf16.msra.mxu0 0
        %999 = vmatprep.subr.bf16.mxu0 0
        %1000 = vmatpush1.bf16.msra.mxu0 0
        %1001 = vmatprep.subr.bf16.mxu0 0
        %1002 = vmatpush1.bf16.msra.mxu0 0
        %1003 = vmatprep.subr.bf16.mxu0 0
        %1004 = vmatpush1.bf16.msra.mxu0 0
        %1005 = vmatprep.subr.bf16.mxu0 0
        %1006 = vmatpush1.bf16.msra.mxu0 0
        %1007 = vmatprep.subr.bf16.mxu0 0
        %1008 = vmatpush1.bf16.msra.mxu0 0
        %1009 = vmatprep.subr.bf16.mxu0 0
        %1010 = vmatpush1.bf16.msra.mxu0 0
        %1011 = vmatprep.subr.bf16.mxu0 0
        %1012 = vmatpush1.bf16.msra.mxu0 0
        %1013 = vmatprep.subr.bf16.mxu0 0
        %1014 = vmatpush1.bf16.msra.mxu0 0
        %1015 = vmatprep.subr.bf16.mxu0 0
        %1016 = vmatpush1.bf16.msra.mxu0 0
        %1017 = vmatprep.mubr.bf16.mxu0 0
        %1018 = vmatmul.mubr.bf16.gmra.mrb[0].mxu0 %v634
        %v1019 = vpop.f32.mrb[0].mxu0
        %v1020 = vadd.f32 0.0, %v1019
        %v1021 = vpop.f32.mrb[0].mxu0
        %v1022 = vpop.f32.mrb[0].mxu0
        %v1023 = vadd.f32 0.0, %v1022
        %v1024 = vpop.f32.mrb[0].mxu0
        %1025 = vdwg.mxu0
        %v1028 = vunpack.c.l.b16 %v973
        %v1029 = vunpack.c.l.b16 %v974
        %v1030 = vpack.c.b16 %v1029, %v1028
        %vm1032 = vcmask 130048
        %v1034 = vsel %vm1032, %v972, 0
        %1036 = vmatprep.subr.bf16.mxu0 0
        %1037 = vmatpush1.bf16.msra.mxu0 %v1030
        %1038 = vmatprep.subr.bf16.mxu0 0
        %1039 = vmatpush1.bf16.msra.mxu0 0
        %1040 = vmatprep.subr.bf16.mxu0 0
        %1041 = vmatpush1.bf16.msra.mxu0 0
        %1042 = vmatprep.subr.bf16.mxu0 0
        %1043 = vmatpush1.bf16.msra.mxu0 0
        %1044 = vmatprep.subr.bf16.mxu0 0
        %1045 = vmatpush1.bf16.msra.mxu0 0
        %1046 = vmatprep.subr.bf16.mxu0 0
        %1047 = vmatpush1.bf16.msra.mxu0 0
        %1048 = vmatprep.subr.bf16.mxu0 0
        %1049 = vmatpush1.bf16.msra.mxu0 0
        %1050 = vmatprep.subr.bf16.mxu0 0
        %1051 = vmatpush1.bf16.msra.mxu0 0
        %1052 = vmatprep.subr.bf16.mxu0 0
        %1053 = vmatpush1.bf16.msra.mxu0 0
        %1054 = vmatprep.subr.bf16.mxu0 0
        %1055 = vmatpush1.bf16.msra.mxu0 0
        %1056 = vmatprep.subr.bf16.mxu0 0
        %1057 = vmatpush1.bf16.msra.mxu0 0
        %1058 = vmatprep.subr.bf16.mxu0 0
        %1059 = vmatpush1.bf16.msra.mxu0 0
        %1060 = vmatprep.subr.bf16.mxu0 0
        %1061 = vmatpush1.bf16.msra.mxu0 0
        %1062 = vmatprep.subr.bf16.mxu0 0
        %1063 = vmatpush1.bf16.msra.mxu0 0
        %1064 = vmatprep.subr.bf16.mxu0 0
        %1065 = vmatpush1.bf16.msra.mxu0 0
        %1066 = vmatprep.subr.bf16.mxu0 0
        %1067 = vmatpush1.bf16.msra.mxu0 0
        %1068 = vmatprep.mubr.bf16.mxu0 0
        %1069 = vmatmul.mubr.bf16.gmra.mrb[0].mxu0 %v1034
        %v1070 = vpop.f32.mrb[0].mxu0
        %v1071 = vadd.f32 %v1020, %v1070
        %v1072 = vpop.f32.mrb[0].mxu0
        %v1073 = vpop.f32.mrb[0].mxu0
        %v1074 = vadd.f32 %v1023, %v1073
        %v1075 = vpop.f32.mrb[0].mxu0
        %1076 = vdwg.mxu0
        %v1077 = vld [vmem:[%s10] sm:$0x1]
        %v1079 = vlaneseq
        %v1080 = vshrl.u32 %v1079, 7
        %v1081 = vsub.s32 0, %v1080
        %v1082 = vrot.slane %v1077, %v1081
        %v1084 = vadd.f32 %v1071, %v1082
        %v1085 = vadd.f32 %v1074, %v1082
        %v1086 = vmax.f32 %v1084, 0.0
        %v1087 = vmax.f32 %v1085, 0.0
        %v1088 = vpack.c.bf16 %v1087, %v1086
        %v1089 = vld [vmem:[#allocation8] sm:$0xff]
        %v1090 = vld [vmem:[#allocation8 + $0x8] sm:$0xff]
        %v1091 = vld [vmem:[#allocation8 + $0x10] sm:$0xff]
        %v1092 = vld [vmem:[#allocation8 + $0x18] sm:$0xff]
        %v1093 = vld [vmem:[#allocation8 + $0x20] sm:$0xff]
        %v1094 = vld [vmem:[#allocation8 + $0x28] sm:$0xff]
        %v1095 = vld [vmem:[#allocation8 + $0x30] sm:$0xff]
        %v1096 = vld [vmem:[#allocation8 + $0x38] sm:$0xff]
        %v1097 = vld [vmem:[#allocation8 + $0x40] sm:$0xff]
        %v1098 = vld [vmem:[#allocation8 + $0x48] sm:$0xff]
        %v1099 = vld [vmem:[#allocation8 + $0x50] sm:$0xff]
        %v1100 = vld [vmem:[#allocation8 + $0x58] sm:$0xff]
        %v1101 = vld [vmem:[#allocation8 + $0x60] sm:$0xff]
        %v1102 = vld [vmem:[#allocation8 + $0x68] sm:$0xff]
        %v1103 = vld [vmem:[#allocation8 + $0x70] sm:$0xff]
        %v1104 = vld [vmem:[#allocation8 + $0x78] sm:$0xff]
        %v1105 = vld [vmem:[%s12] sm:$0x3]
        %v1107 = vlaneseq
        %v1108 = vshrl.u32 %v1107, 7
        %v1109 = vsub.s32 0, %v1108
        %v1110 = vrot.slane %v1105, %v1109
        %v1111 = vlaneseq
        %v1112 = vshrl.u32 %v1111, 7
        %v1113 = vsub.s32 1, %v1112
        %v1114 = vrot.slane %v1105, %v1113
        %v1133 = vunpack.c.l.b16 %v1089
        %v1134 = vunpack.c.h.b16 %v1089
        %v1135 = vunpack.c.l.b16 %v1090
        %v1136 = vunpack.c.h.b16 %v1090
        %v1137 = vunpack.c.l.b16 %v1091
        %v1138 = vunpack.c.h.b16 %v1091
        %v1139 = vunpack.c.l.b16 %v1092
        %v1140 = vunpack.c.h.b16 %v1092
        %v1141 = vunpack.c.l.b16 %v1093
        %v1142 = vunpack.c.h.b16 %v1093
        %v1143 = vunpack.c.l.b16 %v1094
        %v1144 = vunpack.c.h.b16 %v1094
        %v1145 = vunpack.c.l.b16 %v1095
        %v1146 = vunpack.c.h.b16 %v1095
        %v1147 = vunpack.c.l.b16 %v1096
        %v1148 = vunpack.c.h.b16 %v1096
        %v1149 = vunpack.c.l.b16 %v1097
        %v1150 = vunpack.c.h.b16 %v1097
        %v1151 = vunpack.c.l.b16 %v1098
        %v1152 = vunpack.c.h.b16 %v1098
        %v1153 = vunpack.c.l.b16 %v1099
        %v1154 = vunpack.c.h.b16 %v1099
        %v1155 = vunpack.c.l.b16 %v1100
        %v1156 = vunpack.c.h.b16 %v1100
        %v1157 = vunpack.c.l.b16 %v1101
        %v1158 = vunpack.c.h.b16 %v1101
        %v1159 = vunpack.c.l.b16 %v1102
        %v1160 = vunpack.c.h.b16 %v1102
        %v1161 = vunpack.c.l.b16 %v1103
        %v1162 = vunpack.c.h.b16 %v1103
        %v1163 = vunpack.c.l.b16 %v1104
        %v1164 = vunpack.c.h.b16 %v1104
        %v1165 = vpack.c.b16 %v1135, %v1133
        %v1166 = vpack.c.b16 %v1136, %v1134
        %v1167 = vpack.c.b16 %v1139, %v1137
        %v1168 = vpack.c.b16 %v1140, %v1138
        %v1169 = vpack.c.b16 %v1143, %v1141
        %v1170 = vpack.c.b16 %v1144, %v1142
        %v1171 = vpack.c.b16 %v1147, %v1145
        %v1172 = vpack.c.b16 %v1148, %v1146
        %v1173 = vpack.c.b16 %v1151, %v1149
        %v1174 = vpack.c.b16 %v1152, %v1150
        %v1175 = vpack.c.b16 %v1155, %v1153
        %v1176 = vpack.c.b16 %v1156, %v1154
        %v1177 = vpack.c.b16 %v1159, %v1157
        %v1178 = vpack.c.b16 %v1160, %v1158
        %v1179 = vpack.c.b16 %v1163, %v1161
        %v1180 = vpack.c.b16 %v1164, %v1162
        %1197 = vmatprep.subr.bf16.mxu0 %v1166
        %1198 = vmatpush1.bf16.msra.mxu0 %v1165
        %1199 = vmatprep.subr.bf16.mxu0 %v1168
        %1200 = vmatpush1.bf16.msra.mxu0 %v1167
        %1201 = vmatprep.subr.bf16.mxu0 %v1170
        %1202 = vmatpush1.bf16.msra.mxu0 %v1169
        %1203 = vmatprep.subr.bf16.mxu0 %v1172
        %1204 = vmatpush1.bf16.msra.mxu0 %v1171
        %1205 = vmatprep.subr.bf16.mxu0 %v1174
        %1206 = vmatpush1.bf16.msra.mxu0 %v1173
        %1207 = vmatprep.subr.bf16.mxu0 %v1176
        %1208 = vmatpush1.bf16.msra.mxu0 %v1175
        %1209 = vmatprep.subr.bf16.mxu0 %v1178
        %1210 = vmatpush1.bf16.msra.mxu0 %v1177
        %1211 = vmatprep.subr.bf16.mxu0 %v1180
        %1212 = vmatpush1.bf16.msra.mxu0 %v1179
        %1213 = vmatprep.subr.bf16.mxu0 0
        %1214 = vmatpush1.bf16.msra.mxu0 0
        %1215 = vmatprep.subr.bf16.mxu0 0
        %1216 = vmatpush1.bf16.msra.mxu0 0
        %1217 = vmatprep.subr.bf16.mxu0 0
        %1218 = vmatpush1.bf16.msra.mxu0 0
        %1219 = vmatprep.subr.bf16.mxu0 0
        %1220 = vmatpush1.bf16.msra.mxu0 0
        %1221 = vmatprep.subr.bf16.mxu0 0
        %1222 = vmatpush1.bf16.msra.mxu0 0
        %1223 = vmatprep.subr.bf16.mxu0 0
        %1224 = vmatpush1.bf16.msra.mxu0 0
        %1225 = vmatprep.subr.bf16.mxu0 0
        %1226 = vmatpush1.bf16.msra.mxu0 0
        %1227 = vmatprep.subr.bf16.mxu0 0
        %1228 = vmatpush1.bf16.msra.mxu0 0
        %1229 = vmatprep.mubr.bf16.mxu0 0
        %1230 = vmatmul.mubr.bf16.gmra.mrb[0].mxu0 %v1088
        %v1231 = vpop.f32.mrb[0].mxu0
        %v1232 = vadd.f32 %v1110, %v1231
        %v1233 = vpop.f32.mrb[0].mxu0
        %v1234 = vadd.f32 %v1114, %v1233
        %v1235 = vpop.f32.mrb[0].mxu0
        %v1236 = vadd.f32 %v1110, %v1235
        %v1237 = vpop.f32.mrb[0].mxu0
        %v1238 = vadd.f32 %v1114, %v1237
        %1239 = vdwg.mxu0
        %v1240 = vxor.u32 %v1232, 2147483648
        %v1241 = vxor.u32 %v1234, 2147483648
        %v1242 = vxor.u32 %v1236, 2147483648
        %v1243 = vxor.u32 %v1238, 2147483648
        %v1244 = vmul.f32 %v1240, 1.442695
        %v1245 = vpow.pop %v1244
        %v1246 = vmul.f32 %v1241, 1.442695
        %v1247 = vpow.pop %v1246
        %v1248 = vmul.f32 %v1242, 1.442695
        %v1249 = vpow.pop %v1248
        %v1250 = vmul.f32 %v1243, 1.442695
        %v1251 = vpow.pop %v1250
        %v1252 = vadd.f32 %v1245, 1.0
        %v1253 = vadd.f32 %v1247, 1.0
        %v1254 = vadd.f32 %v1249, 1.0
        %v1255 = vadd.f32 %v1251, 1.0
        %v1256 = vrcp.pop %v1252
        %v1257 = vmul.f32 1.0, %v1256
        %v1258 = vrcp.pop %v1253
        %v1259 = vmul.f32 1.0, %v1258
        %v1260 = vrcp.pop %v1254
        %v1261 = vmul.f32 1.0, %v1260
        %v1262 = vrcp.pop %v1255
        %v1263 = vmul.f32 1.0, %v1262
        %v1264 = vpack.c.bf16 %v1261, %v1257
        %v1265 = vpack.c.bf16 %v1263, %v1259
        %v1268 = vunpack.c.l.b16 %v1264
        %v1269 = vunpack.c.l.b16 %v1265
        %v1270 = vunpack.c.h.b16 %v1264
        %v1271 = vunpack.c.h.b16 %v1265
        %v1272 = vpack.c.b16 %v1269, %v1268
        %v1273 = vpack.c.b16 %v1271, %v1270
        %1276 = vst [vmem:[%s554] sm:$0xff] %v1272
        %1277 = vst [vmem:[%s554 + $0x8] sm:$0xff] %v1273
        %1280 = vrot.lane.b32.xlu0 %v970, 32
        %v1281 = vpop.permute.xlu0 %1280
        %1282 = vrot.lane.b32.xlu0 %v971, 32
        %v1283 = vpop.permute.xlu0 %1282
        %vm1286 = vcmask 261120
        %v1287 = vsel %vm1286, %v946, %v1281
        %v1288 = vsel %vm1286, %v949, %v1283
        %vm1289 = vcmask 392192
        %v1290 = vsel %vm1289, %v1287, 0.0
        %v1291 = vsel %vm1289, %v1288, 0.0
        %v1292 = vpack.c.bf16 %v1291, %v1290
        %v1294 = vunpack.c.l.b16 %v1292
        %v1295 = vunpack.c.h.b16 %v1292
        %v1296 = vpack.c.b16 %v1294, %v1294
        %v1297 = vpack.c.b16 %v1295, %v1295
        %1300 = vst [vmem:[%s561] sm:$0xf] %v1296
        %1301 = vst [vmem:[%s561 + $0x4] sm:$0xf] %v1297
        %s1302 = sand.u32 %s331, 1
        %s1303 = scalar_lea.sflag [#allocation4], %s1302
        %s1304 = sand.u32 %s331, 1
        %s1305 = smul.addr %s1304, 16
        %s1306 = scalar_lea.vmem [#allocation10], %s1305
        %s1307 = sand.u32 %s357, 1
        %s1308 = scalar_lea.sflag [#allocation12], %s1307
        %s1309 = sand.u32 %s357, 1
        %s1310 = smul.addr %s1309, 8
        %s1311 = scalar_lea.vmem [#allocation11], %s1310
        // Predicated region
        $region89: #{tpu_custom_call.1} parent=71 // pred_check
          %p1312 = pneg %p341
        $region90: #{tpu_custom_call.1} parent=71 // pred_check_branch
          %1314 = sbr.rel (%p1312) target = $region92
        $region91: #{tpu_custom_call.1} parent=71 // pred_region
          %s1315 = smul.u32 2, %s35
          %s1317 = ssub.s32 256, 256
          %1318 = vsyncadd %s1303, %s1317
          %s1319 = smul.addr %s1315, 2
          %s1320 = smul.addr %s1319, 64
          %s1321 = scalar_lea.hbm %s13, %s1320
          %s1322 = sshll.u32 %s1306, 4
          %s1323 = int_to_ptr.vmem [resolvable:$true] %s1322
          %1328 = dma.vmem_to_hbm [thread:$0]  %s1323, 256, %s1321, %s1303, 128, 128, 8
        $region92: #{tpu_custom_call.1} parent=71 // pred_fallthru
          _
        // Predicated region
        $region93: #{tpu_custom_call.1} parent=71 // pred_check
          %p1329 = pneg %p367
        $region94: #{tpu_custom_call.1} parent=71 // pred_check_branch
          %1331 = sbr.rel (%p1329) target = $region96
        $region95: #{tpu_custom_call.1} parent=71 // pred_region
          %s1332 = smul.u32 2, %s35
          %s1334 = ssub.s32 128, 128
          %1335 = vsyncadd %s1308, %s1334
          %s1336 = smul.addr %s1332, 64
          %s1337 = scalar_lea.hbm %s14, %s1336
          %s1338 = sshll.u32 %s1311, 4
          %s1339 = int_to_ptr.vmem [resolvable:$true] %s1338
          %1344 = dma.vmem_to_hbm [thread:$0]  %s1339, 128, %s1337, %s1308, 64, 64, 4
        $region96: #{tpu_custom_call.1} parent=71 // pred_fallthru
          _
      $region72: #{tpu_custom_call.1} parent=5 // pred_fallthru
        _
      %p1345 = scmp.le.s32.totalorder 2, %s30
      // Predicated region
      $region97: #{tpu_custom_call.1} parent=5 // pred_check
        %p1346 = pneg %p1345
      $region98: #{tpu_custom_call.1} parent=5 // pred_check_branch
        %1348 = sbr.rel (%p1346) target = $region100
      $region99: #{tpu_custom_call.1} parent=5 // pred_region
        %s1349 = ssub.s32 %s30, 2
        // Predicated region
        $region101: #{tpu_custom_call.1} parent=99 // pred_check
          %p1350 = pneg %p347
        $region102: #{tpu_custom_call.1} parent=99 // pred_check_branch
          %1352 = sbr.rel (%p1350) target = $region104
        $region103: #{tpu_custom_call.1} parent=99 // pred_region
          %s1353 = sand.u32 %s332, 1
          %s1354 = scalar_lea.sflag [#allocation4], %s1353
          %s1355 = sand.u32 %s332, 1
          %s1356 = smul.addr %s1355, 16
          %s1357 = scalar_lea.vmem [#allocation10], %s1356
          %1358 = dma.done %s1354, 256
        $region104: #{tpu_custom_call.1} parent=99 // pred_fallthru
          _
        // Predicated region
        $region105: #{tpu_custom_call.1} parent=99 // pred_check
          %p1359 = pneg %p373
        $region106: #{tpu_custom_call.1} parent=99 // pred_check_branch
          %1361 = sbr.rel (%p1359) target = $region108
        $region107: #{tpu_custom_call.1} parent=99 // pred_region
          %s1362 = sand.u32 %s358, 1
          %s1363 = scalar_lea.sflag [#allocation12], %s1362
          %s1364 = sand.u32 %s358, 1
          %s1365 = smul.addr %s1364, 8
          %s1366 = scalar_lea.vmem [#allocation11], %s1365
          %1367 = dma.done %s1363, 128
        $region108: #{tpu_custom_call.1} parent=99 // pred_fallthru
          _
      $region100: #{tpu_custom_call.1} parent=5 // pred_fallthru
        _
    $region6: #{tpu_custom_call.1} parent=1 // loop_footer
      %s34 = sadd.s32 1, %s30
    $region7: #{tpu_custom_call.1} parent=1 // loop_footer_branch
      %29 = sbr.rel target = $region3
    $region8: #{tpu_custom_call.1} parent=1 // loop_exit
      _
    %1368 = vsyncpa [#allocation3], 1
    %s1369 = scalar_lea.sflag [#allocation3], 1
    %1370 = vsyncpa %s1369, 1
    %1371 = vsyncpa [#allocation6], 1
    %1372 = vsyncpa [#allocation9], 1
    %1373 = vsyncpa [#allocation4], 1
    %s1374 = scalar_lea.sflag [#allocation4], 1
    %1375 = vsyncpa %s1374, 1
    %1376 = vsyncpa [#allocation12], 1
    %s1377 = scalar_lea.sflag [#allocation12], 1
    %1378 = vsyncpa %s1377, 1

</llo_original>
